<compile_context>
chip_gen: v5e
topology: v5e:2x2
jax: 0.10.0
libtpu: 0.0.40
codegen_flags: <defaults>
</compile_context>

<pallas_src>
import functools

import jax
import jax.numpy as jnp
from jax.experimental import pallas as pl
from jax.experimental.pallas import tpu as pltpu

BN_EPS = 1e-5

# Padded (MXU / vreg friendly) feature widths.
D_STEM = 512        # synthetic backbone feature width (already aligned)
D_CNN = 512         # arch.fc output, padded 500 -> 512
D_H1 = 512          # meta Linear(n_meta, 500) output, padded 500 -> 512
D_H2 = 256          # meta Linear(500, 250) output, padded 250 -> 256
D_CNN_REAL = 500
D_H2_REAL = 250


def _round_up(x, m):
    return ((x + m - 1) // m) * m


# --------------------------------------------------------------------------------------
# Kernel
# --------------------------------------------------------------------------------------
def net_kernel(
    x_ref, meta_ref,                       # (TB, C, HW_TILE) f32 ; (TB, D_META_P) f32
    w_stem_ref, b_stem_ref,                # synthetic backbone stem (C -> 512)
    w_fc_ref, b_fc_ref,                    # arch.fc (512 -> 500, padded to 512)
    w1_ref, b1_ref,                        # meta Linear 1 with BN1 folded (pad -> 512)
    w2_ref, b2_ref,                        # meta Linear 2 with BN2 folded (pad -> 256)
    wo_cnn_ref, wo_meta_ref, b_out_ref,    # output head Linear(750, 1), split; bias in SMEM
    out_ref,                               # (TB, 1) f32
    pool_acc_ref,                          # VMEM scratch (TB, C) f32
    *, c_in, inv_hw,
):
    k = pl.program_id(1)
    nk = pl.num_programs(1)

    # ---- pooling phase (HBM-bound): accumulate per-channel spatial sums over HW tiles ----
    @pl.when(k == 0)
    def _init():
        pool_acc_ref[...] = jnp.zeros_like(pool_acc_ref)

    pool_acc_ref[...] += jnp.sum(x_ref[...], axis=-1)          # (TB, C)

    # ---- dense head: once per batch tile, after the last HW tile ----
    @pl.when(k == nk - 1)
    def _head():
        pooled = pool_acc_ref[...] * inv_hw                    # global average pool, (TB, C)

        # Synthetic backbone stem (C -> 512): VPU broadcast-accumulate over the C
        # channels; K=C is far too small to be worth an MXU push/pop round trip.
        stem = b_stem_ref[...]                                 # (1, 512)
        for c in range(c_in):                                  # static unroll, C is tiny
            stem = stem + pooled[:, c:c + 1] * w_stem_ref[c:c + 1, :]
        stem = jnp.maximum(stem, 0.0)                          # (TB, 512)

        # arch.fc : 512 -> 500 (padded to 512; padded cols have zero weight/bias).
        cnn = jnp.dot(stem, w_fc_ref[...],
                      preferred_element_type=jnp.float32) + b_fc_ref[...]

        # Meta branch: Linear -> (folded eval-mode BN) -> ReLU, twice.
        # TODO(synk): Dropout(p=0.4) / Dropout(p=0.2) are inference-mode identity here.
        m = meta_ref[...]                                      # (TB, D_META_P)
        h1 = jnp.dot(m, w1_ref[...], preferred_element_type=jnp.float32) + b1_ref[...]
        h1 = jnp.maximum(h1, 0.0)                              # (TB, 512)
        h2 = jnp.dot(h1, w2_ref[...], preferred_element_type=jnp.float32) + b2_ref[...]
        h2 = jnp.maximum(h2, 0.0)                              # (TB, 256)

        # Output head Linear(500+250, 1): concat + N=1 matmul realized as split
        # cross-lane reductions (an N=1 MXU matmul would waste the systolic array).
        out = (jnp.sum(cnn * wo_cnn_ref[...], axis=-1, keepdims=True)
               + jnp.sum(h2 * wo_meta_ref[...], axis=-1, keepdims=True)
               + b_out_ref[0, 0])
        out_ref[...] = out.astype(out_ref.dtype)               # (TB, 1)


# --------------------------------------------------------------------------------------
# Wrapper
# --------------------------------------------------------------------------------------
def _choose_batch_tile(b):
    # Keep meta/out blocks legal: sublane tile must be a multiple of 8 or the full batch.
    if b % 8 == 0:
        return min(b, 8)
    return b


def _choose_hw_tile(hw, tb, c, max_tile_bytes=4 << 20):
    """Largest multiple-of-128 divisor of HW whose x tile fits the per-buffer budget.

    The pipeline double-buffers input tiles; a <=4 MiB tile keeps 2x tile well under
    the VMEM budget even on v7x (64 MiB/TC)."""
    if hw % 128 != 0:
        return hw                                   # full extent (equals array dim: legal)
    max_elems = max(128, max_tile_bytes // (4 * tb * c))
    best = 128
    for t in range(128, hw + 1, 128):
        if hw % t == 0 and t <= max_elems:
            best = t
    return best


def net_forward(x, meta, params, *, hw_tile=None, batch_tile=None):
    """x: (B, C, H, W) float32 NCHW; meta: (B, n_meta) float32; params from prepare_params()."""
    (w_stem, b_stem, w_fc, b_fc, w1, b1, w2, b2, wo_cnn, wo_meta, b_out) = params
    B, C, H, W = x.shape
    HW = H * W
    x3 = x.reshape(B, C, HW)                        # contiguous reshape, no data movement

    d_meta_p = w1.shape[0]
    n_meta = meta.shape[1]
    if n_meta != d_meta_p:                          # zero-pad meta features to padded width
        meta = jnp.pad(meta, ((0, 0), (0, d_meta_p - n_meta)))

    tb = batch_tile if batch_tile is not None else _choose_batch_tile(B)
    assert B % tb == 0 and (tb == B or tb % 8 == 0), "batch tile must keep blocks legal"
    hw_t = hw_tile if hw_tile is not None else _choose_hw_tile(HW, tb, C)
    assert HW % hw_t == 0, "HW tile must divide H*W exactly"
    nb, nk = B // tb, HW // hw_t

    # Resident weights: constant block index -> DMA'd into VMEM once, never re-fetched.
    def resident(arr):
        nd = arr.ndim
        return pl.BlockSpec(arr.shape, lambda *idx, _nd=nd: (0,) * _nd)

    in_specs = [
        pl.BlockSpec((tb, C, hw_t), lambda b, k: (b, 0, k)),       # x: pipelined over (b, k)
        pl.BlockSpec((tb, d_meta_p), lambda b, k: (b, 0)),         # meta: per batch tile
        resident(w_stem), resident(b_stem),
        resident(w_fc), resident(b_fc),
        resident(w1), resident(b1),
        resident(w2), resident(b2),
        resident(wo_cnn), resident(wo_meta),
        pl.BlockSpec(memory_space=pltpu.MemorySpace.SMEM),         # output bias scalar
    ]
    out_specs = pl.BlockSpec((tb, 1), lambda b, k: (b, 0))

    # Explicit VMEM budget: resident weights + double-buffered x/meta tiles + slack.
    weight_bytes = sum(int(p.size) * p.dtype.itemsize
                       for p in (w_stem, b_stem, w_fc, b_fc, w1, b1, w2, b2, wo_cnn, wo_meta))
    tile_bytes = (tb * C * hw_t + tb * d_meta_p) * 4
    vmem_limit = int(min(max(weight_bytes + 2 * tile_bytes + (2 << 20), 16 << 20), 32 << 20))

    kernel = functools.partial(net_kernel, c_in=C, inv_hw=1.0 / float(HW))

    return pl.pallas_call(
        kernel,
        out_shape=jax.ShapeDtypeStruct((B, 1), jnp.float32),
        grid_spec=pltpu.PrefetchScalarGridSpec(
            num_scalar_prefetch=0,
            grid=(nb, nk),
            in_specs=in_specs,
            out_specs=out_specs,
            scratch_shapes=[pltpu.VMEM((tb, C), jnp.float32)],     # pooled-sum accumulator
        ),
        compiler_params=pltpu.CompilerParams(
            dimension_semantics=("parallel", "arbitrary"),
            vmem_limit_bytes=vmem_limit,
        ),
    )(x3, meta, w_stem, b_stem, w_fc, b_fc, w1, b1, w2, b2, wo_cnn, wo_meta, b_out)


# --------------------------------------------------------------------------------------
# Parameters: PyTorch-equivalent raw params, host-side BN folding + padding
# --------------------------------------------------------------------------------------
def _linear_init(key, d_in, d_out):
    k_w, k_b = jax.random.split(key)
    bound = 1.0 / (d_in ** 0.5)
    w = jax.random.uniform(k_w, (d_in, d_out), jnp.float32, -bound, bound)
    b = jax.random.uniform(k_b, (1, d_out), jnp.float32, -bound, bound)
    return w, b


def init_raw_params(key, c_in, n_meta):
    """PyTorch-shaped parameters (unfolded, unpadded), with eval-mode BN statistics."""
    ks = jax.random.split(key, 13)
    w_stem, b_stem = _linear_init(ks[0], c_in, D_STEM)             # synthetic backbone stem
    w_fc, b_fc = _linear_init(ks[1], D_STEM, D_CNN_REAL)           # arch.fc (512 -> 500)
    w1, b1 = _linear_init(ks[2], n_meta, 500)                      # meta[0]
    g1 = 1.0 + 0.2 * jax.random.uniform(ks[3], (1, 500), jnp.float32)
    be1 = 0.1 * jax.random.normal(ks[4], (1, 500), jnp.float32)
    rm1 = 0.1 * jax.random.normal(ks[5], (1, 500), jnp.float32)
    rv1 = 1.0 + 0.2 * jax.random.uniform(ks[6], (1, 500), jnp.float32)
    w2, b2 = _linear_init(ks[7], 500, D_H2_REAL)                   # meta[4]
    g2 = 1.0 + 0.2 * jax.random.uniform(ks[8], (1, 250), jnp.float32)
    be2 = 0.1 * jax.random.normal(ks[9], (1, 250), jnp.float32)
    rm2 = 0.1 * jax.random.normal(ks[10], (1, 250), jnp.float32)
    rv2 = 1.0 + 0.2 * jax.random.uniform(ks[11], (1, 250), jnp.float32)
    w_out, b_out = _linear_init(ks[12], D_CNN_REAL + D_H2_REAL, 1) # self.ouput
    return dict(w_stem=w_stem, b_stem=b_stem, w_fc=w_fc, b_fc=b_fc,
                w1=w1, b1=b1, g1=g1, be1=be1, rm1=rm1, rv1=rv1,
                w2=w2, b2=b2, g2=g2, be2=be2, rm2=rm2, rv2=rv2,
                w_out=w_out, b_out=b_out)


def _fold_bn(w, b, gamma, beta, mean, var):
    scale = gamma / jnp.sqrt(var + BN_EPS)          # (1, N)
    return w * scale, (b - mean) * scale + beta


def _pad2(a, rows, cols):
    return jnp.pad(a, ((0, rows - a.shape[0]), (0, cols - a.shape[1])))


def prepare_params(raw, n_meta):
    """Host-side prep: fold eval-mode BatchNorms into the Linears, zero-pad feature dims
    to MXU/vreg-friendly sizes (padded lanes stay exactly 0 through ReLU and carry zero
    output weight), and split the 750->1 output weight into cnn / meta row vectors."""
    d_meta_p = _round_up(max(n_meta, 1), 128)

    w_fc = _pad2(raw["w_fc"], D_STEM, D_CNN)
    b_fc = _pad2(raw["b_fc"], 1, D_CNN)

    w1f, b1f = _fold_bn(raw["w1"], raw["b1"], raw["g1"], raw["be1"], raw["rm1"], raw["rv1"])
    w1 = _pad2(w1f, d_meta_p, D_H1)
    b1 = _pad2(b1f, 1, D_H1)

    w2f, b2f = _fold_bn(raw["w2"], raw["b2"], raw["g2"], raw["be2"], raw["rm2"], raw["rv2"])
    w2 = _pad2(w2f, D_H1, D_H2)
    b2 = _pad2(b2f, 1, D_H2)

    wo_cnn = _pad2(raw["w_out"][:D_CNN_REAL, :].T, 1, D_CNN)       # (1, 512)
    wo_meta = _pad2(raw["w_out"][D_CNN_REAL:, :].T, 1, D_H2)       # (1, 256)
    b_out = raw["b_out"].reshape(1, 1)

    return (raw["w_stem"], raw["b_stem"], w_fc, b_fc, w1, b1, w2, b2, wo_cnn, wo_meta, b_out)


# --------------------------------------------------------------------------------------
# Pure-JAX reference of the PyTorch forward (eval mode), using the raw parameters
# --------------------------------------------------------------------------------------
def net_reference(x, meta, raw):
    B, C, H, W = x.shape
    pooled = x.reshape(B, C, H * W).mean(axis=-1)
    stem = jnp.maximum(pooled @ raw["w_stem"] + raw["b_stem"], 0.0)
    cnn = stem @ raw["w_fc"] + raw["b_fc"]

    def bn(h, g, be, rm, rv):
        return (h - rm) / jnp.sqrt(rv + BN_EPS) * g + be

    h1 = jnp.maximum(bn(meta @ raw["w1"] + raw["b1"],
                        raw["g1"], raw["be1"], raw["rm1"], raw["rv1"]), 0.0)
    h2 = jnp.maximum(bn(h1 @ raw["w2"] + raw["b2"],
                        raw["g2"], raw["be2"], raw["rm2"], raw["rv2"]), 0.0)
    feats = jnp.concatenate([cnn, h2], axis=1)
    return feats @ raw["w_out"] + raw["b_out"]


if __name__ == "__main__":
    key = jax.random.PRNGKey(0)
    k_x, k_meta, k_params = jax.random.split(key, 3)

    B, C, H, W = 2, 3, 16, 16
    n_meta = 8

    x = jax.random.normal(k_x, (B, C, H, W), jnp.float32)          # NCHW, like PyTorch
    meta = jax.random.normal(k_meta, (B, n_meta), jnp.float32)

    raw = init_raw_params(k_params, C, n_meta)
    params = prepare_params(raw, n_meta)

    # hw_tile=128 so the demo actually exercises the multi-step pooled-sum pipeline (NK=2).
    out = net_forward(x, meta, params, hw_tile=128)
    out = jax.block_until_ready(out)

    ref = net_reference(x, meta, raw)
    assert out.shape == (B, 1)
    assert bool(jnp.all(jnp.isfinite(out)))
    assert bool(jnp.allclose(out, ref, rtol=2e-2, atol=2e-2)), (out, ref)
    print("KERNEL_OK")
</pallas_src>

<mosaic_0001>
module attributes {stable_mosaic.version = 11 : i64} {
  func.func @net_kernel(%arg0: i32, %arg1: i32, %arg2: memref<2x3x128xf32, #tpu.memory_space<vmem>>, %arg3: memref<2x128xf32, #tpu.memory_space<vmem>>, %arg4: memref<3x512xf32, #tpu.memory_space<vmem>>, %arg5: memref<1x512xf32, #tpu.memory_space<vmem>>, %arg6: memref<512x512xf32, #tpu.memory_space<vmem>>, %arg7: memref<1x512xf32, #tpu.memory_space<vmem>>, %arg8: memref<128x512xf32, #tpu.memory_space<vmem>>, %arg9: memref<1x512xf32, #tpu.memory_space<vmem>>, %arg10: memref<512x256xf32, #tpu.memory_space<vmem>>, %arg11: memref<1x256xf32, #tpu.memory_space<vmem>>, %arg12: memref<1x512xf32, #tpu.memory_space<vmem>>, %arg13: memref<1x256xf32, #tpu.memory_space<vmem>>, %arg14: memref<1x1xf32, #tpu.memory_space<smem>>, %arg15: memref<2x1xf32, #tpu.memory_space<vmem>>, %arg16: memref<2x3xf32, #tpu.memory_space<vmem>>) attributes {dimension_semantics = [#tpu.dimension_semantics<parallel>, #tpu.dimension_semantics<arbitrary>], iteration_bounds = array<i64: 1, 2>, scalar_prefetch = 0 : i64, scratch_operands = 1 : i64, tpu.core_type = #tpu.core_type<tc>, window_params = [{transform_indices = @transform_0, window_bounds = array<i64: 2, 3, 128>}, {transform_indices = @transform_1, window_bounds = array<i64: 2, 128>}, {pipeline_mode = #tpu.pipeline_mode<synchronous>, transform_indices = @transform_2, window_bounds = array<i64: 3, 512>}, {pipeline_mode = #tpu.pipeline_mode<synchronous>, transform_indices = @transform_3, window_bounds = array<i64: 1, 512>}, {pipeline_mode = #tpu.pipeline_mode<synchronous>, transform_indices = @transform_4, window_bounds = array<i64: 512, 512>}, {pipeline_mode = #tpu.pipeline_mode<synchronous>, transform_indices = @transform_5, window_bounds = array<i64: 1, 512>}, {pipeline_mode = #tpu.pipeline_mode<synchronous>, transform_indices = @transform_6, window_bounds = array<i64: 128, 512>}, {pipeline_mode = #tpu.pipeline_mode<synchronous>, transform_indices = @transform_7, window_bounds = array<i64: 1, 512>}, {pipeline_mode = #tpu.pipeline_mode<synchronous>, transform_indices = @transform_8, window_bounds = array<i64: 512, 256>}, {pipeline_mode = #tpu.pipeline_mode<synchronous>, transform_indices = @transform_9, window_bounds = array<i64: 1, 256>}, {pipeline_mode = #tpu.pipeline_mode<synchronous>, transform_indices = @transform_10, window_bounds = array<i64: 1, 512>}, {pipeline_mode = #tpu.pipeline_mode<synchronous>, transform_indices = @transform_11, window_bounds = array<i64: 1, 256>}, {transform_indices = @transform_12, window_bounds = array<i64: 1, 1>}, {transform_indices = @transform_13, window_bounds = array<i64: 2, 1>}]} {
    %c0_i32 = arith.constant 0 : i32
    %0 = arith.cmpi eq, %arg1, %c0_i32 : i32
    %1 = arith.extui %0 : i1 to i32
    %c0_i32_0 = arith.constant 0 : i32
    %2 = arith.cmpi ne, %1, %c0_i32_0 : i32
    scf.if %2 {
      %cst_8 = arith.constant 0.000000e+00 : f32
      %11 = vector.broadcast %cst_8 : f32 to vector<2x3xf32>
      %c0_9 = arith.constant 0 : index
      %c0_10 = arith.constant 0 : index
      %12 = vector.load %arg16[%c0_9, %c0_10] : memref<2x3xf32, #tpu.memory_space<vmem>>, vector<2x3xf32>
      tpu.vector_store %arg16[%c0_9, %c0_10], %11 {strides = array<i32>} : memref<2x3xf32, #tpu.memory_space<vmem>>, vector<2x3xf32>,
    } else {
    }
    %c0 = arith.constant 0 : index
    %c0_1 = arith.constant 0 : index
    %3 = vector.load %arg16[%c0, %c0_1] : memref<2x3xf32, #tpu.memory_space<vmem>>, vector<2x3xf32>
    %c0_2 = arith.constant 0 : index
    %c0_3 = arith.constant 0 : index
    %c0_4 = arith.constant 0 : index
    %4 = vector.load %arg2[%c0_2, %c0_3, %c0_4] : memref<2x3x128xf32, #tpu.memory_space<vmem>>, vector<2x3x128xf32>
    %cst = arith.constant dense<0.000000e+00> : vector<2x3xf32>
    %5 = vector.multi_reduction <add>, %4, %cst [2] : vector<2x3x128xf32> to vector<2x3xf32>
    %6 = arith.addf %3, %5 : vector<2x3xf32>
    %c0_5 = arith.constant 0 : index
    %c0_6 = arith.constant 0 : index
    %7 = vector.load %arg16[%c0_5, %c0_6] : memref<2x3xf32, #tpu.memory_space<vmem>>, vector<2x3xf32>
    tpu.vector_store %arg16[%c0_5, %c0_6], %6 {strides = array<i32>} : memref<2x3xf32, #tpu.memory_space<vmem>>, vector<2x3xf32>,
    %c1_i32 = arith.constant 1 : i32
    %8 = arith.cmpi eq, %arg1, %c1_i32 : i32
    %9 = arith.extui %8 : i1 to i32
    %c0_i32_7 = arith.constant 0 : i32
    %10 = arith.cmpi ne, %9, %c0_i32_7 : i32
    scf.if %10 {
      %c0_8 = arith.constant 0 : index
      %c0_9 = arith.constant 0 : index
      %11 = vector.load %arg16[%c0_8, %c0_9] : memref<2x3xf32, #tpu.memory_space<vmem>>, vector<2x3xf32>
      %cst_10 = arith.constant 3.906250e-03 : f32
      %12 = vector.broadcast %cst_10 : f32 to vector<2x3xf32>
      %13 = arith.mulf %11, %12 : vector<2x3xf32>
      %c0_11 = arith.constant 0 : index
      %c0_12 = arith.constant 0 : index
      %14 = vector.load %arg5[%c0_11, %c0_12] : memref<1x512xf32, #tpu.memory_space<vmem>>, vector<1x512xf32>
      %15 = vector.extract_strided_slice %13 {offsets = [0, 0], sizes = [2, 1], strides = [1, 1]} : vector<2x3xf32> to vector<2x1xf32>
      %c0_13 = arith.constant 0 : index
      %c0_14 = arith.constant 0 : index
      %16 = vector.load %arg4[%c0_13, %c0_14] : memref<3x512xf32, #tpu.memory_space<vmem>>, vector<1x512xf32>
      %17 = vector.broadcast %15 : vector<2x1xf32> to vector<2x512xf32>
      %18 = vector.broadcast %16 : vector<1x512xf32> to vector<2x512xf32>
      %19 = arith.mulf %17, %18 : vector<2x512xf32>
      %20 = vector.broadcast %14 : vector<1x512xf32> to vector<2x512xf32>
      %21 = arith.addf %20, %19 : vector<2x512xf32>
      %22 = vector.extract_strided_slice %13 {offsets = [0, 1], sizes = [2, 1], strides = [1, 1]} : vector<2x3xf32> to vector<2x1xf32>
      %c1 = arith.constant 1 : index
      %c0_15 = arith.constant 0 : index
      %23 = vector.load %arg4[%c1, %c0_15] : memref<3x512xf32, #tpu.memory_space<vmem>>, vector<1x512xf32>
      %24 = vector.broadcast %22 : vector<2x1xf32> to vector<2x512xf32>
      %25 = vector.broadcast %23 : vector<1x512xf32> to vector<2x512xf32>
      %26 = arith.mulf %24, %25 : vector<2x512xf32>
      %27 = arith.addf %21, %26 : vector<2x512xf32>
      %28 = vector.extract_strided_slice %13 {offsets = [0, 2], sizes = [2, 1], strides = [1, 1]} : vector<2x3xf32> to vector<2x1xf32>
      %c2 = arith.constant 2 : index
      %c0_16 = arith.constant 0 : index
      %29 = vector.load %arg4[%c2, %c0_16] : memref<3x512xf32, #tpu.memory_space<vmem>>, vector<1x512xf32>
      %30 = vector.broadcast %28 : vector<2x1xf32> to vector<2x512xf32>
      %31 = vector.broadcast %29 : vector<1x512xf32> to vector<2x512xf32>
      %32 = arith.mulf %30, %31 : vector<2x512xf32>
      %33 = arith.addf %27, %32 : vector<2x512xf32>
      %cst_17 = arith.constant 0.000000e+00 : f32
      %34 = vector.broadcast %cst_17 : f32 to vector<2x512xf32>
      %35 = arith.maximumf %33, %34 : vector<2x512xf32>
      %c0_18 = arith.constant 0 : index
      %c0_19 = arith.constant 0 : index
      %36 = vector.load %arg6[%c0_18, %c0_19] : memref<512x512xf32, #tpu.memory_space<vmem>>, vector<512x512xf32>
      %cst_20 = arith.constant dense<0.000000e+00> : vector<2x512xf32>
      %37 = tpu.matmul %35, %36, %cst_20 {dimension_numbers = #tpu.dot_dimension_numbers<[1], [0], [0], [1], [0, 0, 1, 1], [], []>} : vector<2x512xf32>, vector<512x512xf32>, vector<2x512xf32> -> vector<2x512xf32>
      %c0_21 = arith.constant 0 : index
      %c0_22 = arith.constant 0 : index
      %38 = vector.load %arg7[%c0_21, %c0_22] : memref<1x512xf32, #tpu.memory_space<vmem>>, vector<1x512xf32>
      %39 = vector.broadcast %38 : vector<1x512xf32> to vector<2x512xf32>
      %40 = arith.addf %37, %39 : vector<2x512xf32>
      %c0_23 = arith.constant 0 : index
      %c0_24 = arith.constant 0 : index
      %41 = vector.load %arg3[%c0_23, %c0_24] : memref<2x128xf32, #tpu.memory_space<vmem>>, vector<2x128xf32>
      %c0_25 = arith.constant 0 : index
      %c0_26 = arith.constant 0 : index
      %42 = vector.load %arg8[%c0_25, %c0_26] : memref<128x512xf32, #tpu.memory_space<vmem>>, vector<128x512xf32>
      %cst_27 = arith.constant dense<0.000000e+00> : vector<2x512xf32>
      %43 = tpu.matmul %41, %42, %cst_27 {dimension_numbers = #tpu.dot_dimension_numbers<[1], [0], [0], [1], [0, 0, 1, 1], [], []>} : vector<2x128xf32>, vector<128x512xf32>, vector<2x512xf32> -> vector<2x512xf32>
      %c0_28 = arith.constant 0 : index
      %c0_29 = arith.constant 0 : index
      %44 = vector.load %arg9[%c0_28, %c0_29] : memref<1x512xf32, #tpu.memory_space<vmem>>, vector<1x512xf32>
      %45 = vector.broadcast %44 : vector<1x512xf32> to vector<2x512xf32>
      %46 = arith.addf %43, %45 : vector<2x512xf32>
      %cst_30 = arith.constant 0.000000e+00 : f32
      %47 = vector.broadcast %cst_30 : f32 to vector<2x512xf32>
      %48 = arith.maximumf %46, %47 : vector<2x512xf32>
      %c0_31 = arith.constant 0 : index
      %c0_32 = arith.constant 0 : index
      %49 = vector.load %arg10[%c0_31, %c0_32] : memref<512x256xf32, #tpu.memory_space<vmem>>, vector<512x256xf32>
      %cst_33 = arith.constant dense<0.000000e+00> : vector<2x256xf32>
      %50 = tpu.matmul %48, %49, %cst_33 {dimension_numbers = #tpu.dot_dimension_numbers<[1], [0], [0], [1], [0, 0, 1, 1], [], []>} : vector<2x512xf32>, vector<512x256xf32>, vector<2x256xf32> -> vector<2x256xf32>
      %c0_34 = arith.constant 0 : index
      %c0_35 = arith.constant 0 : index
      %51 = vector.load %arg11[%c0_34, %c0_35] : memref<1x256xf32, #tpu.memory_space<vmem>>, vector<1x256xf32>
      %52 = vector.broadcast %51 : vector<1x256xf32> to vector<2x256xf32>
      %53 = arith.addf %50, %52 : vector<2x256xf32>
      %cst_36 = arith.constant 0.000000e+00 : f32
      %54 = vector.broadcast %cst_36 : f32 to vector<2x256xf32>
      %55 = arith.maximumf %53, %54 : vector<2x256xf32>
      %c0_37 = arith.constant 0 : index
      %c0_38 = arith.constant 0 : index
      %56 = vector.load %arg12[%c0_37, %c0_38] : memref<1x512xf32, #tpu.memory_space<vmem>>, vector<1x512xf32>
      %57 = vector.broadcast %56 : vector<1x512xf32> to vector<2x512xf32>
      %58 = arith.mulf %40, %57 : vector<2x512xf32>
      %cst_39 = arith.constant dense<0.000000e+00> : vector<2xf32>
      %59 = vector.multi_reduction <add>, %58, %cst_39 [1] : vector<2x512xf32> to vector<2xf32>
      %60 = vector.shape_cast %59 : vector<2xf32> to vector<2x1xf32>
      %c0_40 = arith.constant 0 : index
      %c0_41 = arith.constant 0 : index
      %61 = vector.load %arg13[%c0_40, %c0_41] : memref<1x256xf32, #tpu.memory_space<vmem>>, vector<1x256xf32>
      %62 = vector.broadcast %61 : vector<1x256xf32> to vector<2x256xf32>
      %63 = arith.mulf %55, %62 : vector<2x256xf32>
      %cst_42 = arith.constant dense<0.000000e+00> : vector<2xf32>
      %64 = vector.multi_reduction <add>, %63, %cst_42 [1] : vector<2x256xf32> to vector<2xf32>
      %65 = vector.shape_cast %64 : vector<2xf32> to vector<2x1xf32>
      %66 = arith.addf %60, %65 : vector<2x1xf32>
      %c0_43 = arith.constant 0 : index
      %c0_44 = arith.constant 0 : index
      %67 = memref.load %arg14[%c0_43, %c0_44] : memref<1x1xf32, #tpu.memory_space<smem>>
      %68 = vector.broadcast %67 : f32 to vector<2x1xf32>
      %69 = arith.addf %66, %68 : vector<2x1xf32>
      %c0_45 = arith.constant 0 : index
      %c0_46 = arith.constant 0 : index
      %70 = vector.load %arg15[%c0_45, %c0_46] : memref<2x1xf32, #tpu.memory_space<vmem>>, vector<2x1xf32>
      tpu.vector_store %arg15[%c0_45, %c0_46], %69 {strides = array<i32>} : memref<2x1xf32, #tpu.memory_space<vmem>>, vector<2x1xf32>,
    } else {
    }
    return
  }
  func.func @transform_0(%arg0: i32, %arg1: i32) -> (i32, i32, i32) {
    %c0_i32 = arith.constant 0 : i32
    %c0_i32_0 = arith.constant 0 : i32
    return %arg0, %c0_i32, %arg1 : i32, i32, i32
  }
  func.func @transform_1(%arg0: i32, %arg1: i32) -> (i32, i32) {
    %c0_i32 = arith.constant 0 : i32
    %c0_i32_0 = arith.constant 0 : i32
    return %arg0, %c0_i32 : i32, i32
  }
  func.func @transform_2(%arg0: i32, %arg1: i32) -> (i32, i32) {
    %c0_i32 = arith.constant 0 : i32
    %c0_i32_0 = arith.constant 0 : i32
    %c0_i32_1 = arith.constant 0 : i32
    return %c0_i32, %c0_i32_0 : i32, i32
  }
  func.func @transform_3(%arg0: i32, %arg1: i32) -> (i32, i32) {
    %c0_i32 = arith.constant 0 : i32
    %c0_i32_0 = arith.constant 0 : i32
    %c0_i32_1 = arith.constant 0 : i32
    return %c0_i32, %c0_i32_0 : i32, i32
  }
  func.func @transform_4(%arg0: i32, %arg1: i32) -> (i32, i32) {
    %c0_i32 = arith.constant 0 : i32
    %c0_i32_0 = arith.constant 0 : i32
    %c0_i32_1 = arith.constant 0 : i32
    return %c0_i32, %c0_i32_0 : i32, i32
  }
  func.func @transform_5(%arg0: i32, %arg1: i32) -> (i32, i32) {
    %c0_i32 = arith.constant 0 : i32
    %c0_i32_0 = arith.constant 0 : i32
    %c0_i32_1 = arith.constant 0 : i32
    return %c0_i32, %c0_i32_0 : i32, i32
  }
  func.func @transform_6(%arg0: i32, %arg1: i32) -> (i32, i32) {
    %c0_i32 = arith.constant 0 : i32
    %c0_i32_0 = arith.constant 0 : i32
    %c0_i32_1 = arith.constant 0 : i32
    return %c0_i32, %c0_i32_0 : i32, i32
  }
  func.func @transform_7(%arg0: i32, %arg1: i32) -> (i32, i32) {
    %c0_i32 = arith.constant 0 : i32
    %c0_i32_0 = arith.constant 0 : i32
    %c0_i32_1 = arith.constant 0 : i32
    return %c0_i32, %c0_i32_0 : i32, i32
  }
  func.func @transform_8(%arg0: i32, %arg1: i32) -> (i32, i32) {
    %c0_i32 = arith.constant 0 : i32
    %c0_i32_0 = arith.constant 0 : i32
    %c0_i32_1 = arith.constant 0 : i32
    return %c0_i32, %c0_i32_0 : i32, i32
  }
  func.func @transform_9(%arg0: i32, %arg1: i32) -> (i32, i32) {
    %c0_i32 = arith.constant 0 : i32
    %c0_i32_0 = arith.constant 0 : i32
    %c0_i32_1 = arith.constant 0 : i32
    return %c0_i32, %c0_i32_0 : i32, i32
  }
  func.func @transform_10(%arg0: i32, %arg1: i32) -> (i32, i32) {
    %c0_i32 = arith.constant 0 : i32
    %c0_i32_0 = arith.constant 0 : i32
    %c0_i32_1 = arith.constant 0 : i32
    return %c0_i32, %c0_i32_0 : i32, i32
  }
  func.func @transform_11(%arg0: i32, %arg1: i32) -> (i32, i32) {
    %c0_i32 = arith.constant 0 : i32
    %c0_i32_0 = arith.constant 0 : i32
    %c0_i32_1 = arith.constant 0 : i32
    return %c0_i32, %c0_i32_0 : i32, i32
  }
  func.func @transform_12(%arg0: i32, %arg1: i32) -> (i32, i32) {
    %c0_i32 = arith.constant 0 : i32
    %c0_i32_0 = arith.constant 0 : i32
    %c0_i32_1 = arith.constant 0 : i32
    return %c0_i32, %c0_i32_0 : i32, i32
  }
  func.func @transform_13(%arg0: i32, %arg1: i32) -> (i32, i32) {
    %c0_i32 = arith.constant 0 : i32
    %c0_i32_0 = arith.constant 0 : i32
    return %arg0, %c0_i32 : i32, i32
  }
}

</mosaic_0001>

<llo_original>
// kernel: tpu_custom_call.1
$region0: #{tpu_custom_call.1}
  #allocation0 [shape = 'u32[]', space=smem, size = 0x4, offset = 0x4, fixed_abs, tag = 'smem constant byte address 0x4 - core index']
  #allocation1 [shape = 'u32[72,128]{1,0:T(1,128)}', space=vmem, size = 0x9000, scoped, tag = 'internal scratch']
  #allocation2 [shape = 'f32[2,3]{1,0:T(2,128)}', space=vmem, size = 0x400, scoped, tag = 'scratch operand']
  #allocation3 [shape = 'f32[1,1]{1,0:T(1,128)S(6)}', space=smem, size = 0x200, scoped, tag = 'scoped memory for tpu_custom_call.1']
  %s0 = inlined_call_operand.vmem [shape: f32[2,3,256], index: 0, kind: input, shape index: {}]
  %s1 = inlined_call_operand.hbm [shape: f32[2,128], index: 1, kind: input, shape index: {}]
  %s2 = inlined_call_operand.vmem [shape: f32[3,512], index: 2, kind: input, shape index: {}]
  %s3 = inlined_call_operand.vmem [shape: f32[1,512], index: 3, kind: input, shape index: {}]
  %s4 = inlined_call_operand.hbm [shape: f32[512,512], index: 4, kind: input, shape index: {}]
  %s5 = inlined_call_operand.vmem [shape: f32[1,512], index: 5, kind: input, shape index: {}]
  %s6 = inlined_call_operand.hbm [shape: f32[128,512], index: 6, kind: input, shape index: {}]
  %s7 = inlined_call_operand.vmem [shape: f32[1,512], index: 7, kind: input, shape index: {}]
  %s8 = inlined_call_operand.hbm [shape: f32[512,256], index: 8, kind: input, shape index: {}]
  %s9 = inlined_call_operand.vmem [shape: f32[1,256], index: 9, kind: input, shape index: {}]
  %s10 = inlined_call_operand.vmem [shape: f32[1,512], index: 10, kind: input, shape index: {}]
  %s11 = inlined_call_operand.vmem [shape: f32[1,256], index: 11, kind: input, shape index: {}]
  %s12 = inlined_call_operand.<no memory space> [shape: f32[1,1], index: 12, kind: input, shape index: {}]
  %s13 = inlined_call_operand.vmem [shape: f32[2,1], index: 13, kind: output, shape index: {}]
  %s14 = sld [smem:[#allocation0]]
  $region150: #{tpu_custom_call.1} parent=0
    _
  %s16 = ssub.s32 1, %s14
  %s17 = scalar_select 0, %s16, %s14
  %18 = sst [smem:[#allocation3]] %s12
  $region1: #{tpu_custom_call.1} parent=0
    #allocation4 [shape = 'u8[8192]{0}', space=vmem, size = 0x2000, scoped, tag = 'input window, operand 0']
    #allocation5 [shape = 'u8[1024]{0}', space=vmem, size = 0x400, scoped, tag = 'input window, operand 1, single buffered']
    #allocation6 [shape = 's32[2]{0}', space=sflag, size = 0x8, scoped, tag = 'scoped memory for tpu_custom_call.1']
    #allocation7 [shape = 'u8[1048576]{0}', space=vmem, size = 0x100000, scoped, tag = 'input window, operand 4, single buffered']
    #allocation8 [shape = 's32[1]{0}', space=sflag, size = 0x4, scoped, tag = 'scoped memory for tpu_custom_call.1']
    #allocation9 [shape = 'u8[262144]{0}', space=vmem, size = 0x40000, scoped, tag = 'input window, operand 6, single buffered']
    #allocation10 [shape = 'u8[524288]{0}', space=vmem, size = 0x80000, scoped, tag = 'input window, operand 8, single buffered']
    #allocation11 [shape = 's32[1]{0}', space=sflag, size = 0x4, scoped, tag = 'scoped memory for tpu_custom_call.1']
    %19 = vsyncpa [#allocation6], 0
    %20 = vsyncpa [#allocation8], 0
    %21 = vsyncpa [#allocation11], 0
    loop: start=0, step=1, limit=4
    $region2: #{tpu_custom_call.1} parent=1 // loop_pre_header
      _
    $region3: #{tpu_custom_call.1} parent=1 // loop_header
      %s23 = sphi 0, %s27
      %p24 = scmp.ge.s32.totalorder %s23, 4
      %s30 = sphi 0, %s42
      %s31 = sphi 0, %s38
      %s32 = sphi 0, %s30
      %s33 = sphi 0, %s31
      %s34 = sphi 0, %s32
      %s35 = sphi 0, %s33
      %s47 = sphi 0, %s49
      %s50 = sphi 0, %s47
      %s51 = sphi 0, %s50
      %s67 = sphi 0, %s51
      %s73 = sphi 0, %s75
      %s76 = sphi 0, %s73
      %s77 = sphi 0, %s76
      %s93 = sphi 0, %s77
      %s97 = sphi 0, %s97
      %s99 = sphi 0, %s97
      %s100 = sphi 0, %s99
      %s114 = sphi 0, %s100
      %s118 = sphi 0, %s118
      %s120 = sphi 0, %s118
      %s121 = sphi 0, %s120
      %s135 = sphi 0, %s121
      %s139 = sphi 0, %s139
      %s141 = sphi 0, %s139
      %s142 = sphi 0, %s141
      %s156 = sphi 0, %s142
      %s160 = sphi 0, %s160
      %s162 = sphi 0, %s160
      %s163 = sphi 0, %s162
      %s177 = sphi 0, %s163
      %s181 = sphi 0, %s181
      %s183 = sphi 0, %s181
      %s184 = sphi 0, %s183
      %s198 = sphi 0, %s184
      %s202 = sphi 0, %s202
      %s204 = sphi 0, %s202
      %s205 = sphi 0, %s204
      %s219 = sphi 0, %s205
      %s223 = sphi 0, %s223
      %s225 = sphi 0, %s223
      %s226 = sphi 0, %s225
      %s240 = sphi 0, %s226
      %s244 = sphi 0, %s244
      %s246 = sphi 0, %s244
      %s247 = sphi 0, %s246
      %s261 = sphi 0, %s247
      %s265 = sphi 0, %s265
      %s267 = sphi 0, %s265
      %s268 = sphi 0, %s267
      %s282 = sphi 0, %s268
      %s286 = sphi 0, %s286
      %s288 = sphi 0, %s286
      %s289 = sphi 0, %s288
      %s303 = sphi 0, %s289
      %s307 = sphi 0, %s307
      %s309 = sphi 0, %s307
      %s310 = sphi 0, %s309
      %s324 = sphi 0, %s310
      %s330 = sphi 0, %s332
      %s333 = sphi 0, %s330
      %s334 = sphi 0, %s333
      %s350 = sphi 0, %s334
    $region4: #{tpu_custom_call.1} parent=1 // loop_header_branch
      %26 = sbr.rel (%p24) target = $region8
    $region5: #{tpu_custom_call.1} parent=1 // loop_body
      %s28 = ssub.s32 %s23, 1
      %s29 = ssub.s32 %s23, 2
      %s36 = sadd.s32 1, %s31
      %p37 = scmp.ge.s32.totalorder %s36, 2
      %s38 = scalar_select %p37, 0, %s36
      %s39 = sadd.s32 1, %s30
      %s40 = scalar_select %p37, %s39, %s30
      %p41 = scmp.ge.s32.totalorder %s40, 1
      %s42 = scalar_select %p41, 0, %s40
      %s43 = ssub.s32 %s30, %s42
      %s44 = ssub.s32 %s31, %s38
      %s45 = sor.u32 %s43, %s44
      %p46 = scmp.eq.s32.totalorder %s45, 0
      %s48 = sadd.s32 %s47, 1
      %s49 = scalar_select %p46, %s47, %s48
      %p52 = pneg %p46
      %p53 = scmp.eq.s32.totalorder %s23, 1
      %p54 = por %p52, %p53
      %p55 = scmp.ne.s32.totalorder %s47, %s50
      %p56 = scmp.eq.s32.totalorder %s23, 0
      %p57 = por %p55, %p56
      %p58 = scmp.ne.s32.totalorder %s47, %s50
      %p59 = scmp.eq.s32.totalorder %s28, 1
      %p60 = por %p58, %p59
      %p61 = scmp.ne.s32.totalorder %s50, %s51
      %p62 = scmp.eq.s32.totalorder %s28, 0
      %p63 = por %p61, %p62
      %p64 = scmp.ne.s32.totalorder %s50, %s51
      %p65 = scmp.eq.s32.totalorder %s29, 1
      %p66 = por %p64, %p65
      %p68 = scmp.ne.s32.totalorder %s51, %s67
      %p69 = scmp.eq.s32.totalorder %s29, 0
      %p70 = por %p68, %p69
      %s71 = ssub.s32 %s30, %s42
      %p72 = scmp.eq.s32.totalorder %s71, 0
      %s74 = sadd.s32 %s73, 1
      %s75 = scalar_select %p72, %s73, %s74
      %p78 = pneg %p72
      %p79 = scmp.eq.s32.totalorder %s23, 1
      %p80 = por %p78, %p79
      %p81 = scmp.ne.s32.totalorder %s73, %s76
      %p82 = scmp.eq.s32.totalorder %s23, 0
      %p83 = por %p81, %p82
      %p84 = scmp.ne.s32.totalorder %s73, %s76
      %p85 = scmp.eq.s32.totalorder %s28, 1
      %p86 = por %p84, %p85
      %p87 = scmp.ne.s32.totalorder %s76, %s77
      %p88 = scmp.eq.s32.totalorder %s28, 0
      %p89 = por %p87, %p88
      %p90 = scmp.ne.s32.totalorder %s76, %s77
      %p91 = scmp.eq.s32.totalorder %s29, 1
      %p92 = por %p90, %p91
      %p94 = scmp.ne.s32.totalorder %s77, %s93
      %p95 = scmp.eq.s32.totalorder %s29, 0
      %p96 = por %p94, %p95
      %s98 = sadd.s32 %s97, 1
      %p101 = scmp.eq.s32.totalorder %s23, 1
      %p102 = scmp.ne.s32.totalorder %s97, %s99
      %p103 = scmp.eq.s32.totalorder %s23, 0
      %p104 = por %p102, %p103
      %p105 = scmp.ne.s32.totalorder %s97, %s99
      %p106 = scmp.eq.s32.totalorder %s28, 1
      %p107 = por %p105, %p106
      %p108 = scmp.ne.s32.totalorder %s99, %s100
      %p109 = scmp.eq.s32.totalorder %s28, 0
      %p110 = por %p108, %p109
      %p111 = scmp.ne.s32.totalorder %s99, %s100
      %p112 = scmp.eq.s32.totalorder %s29, 1
      %p113 = por %p111, %p112
      %p115 = scmp.ne.s32.totalorder %s100, %s114
      %p116 = scmp.eq.s32.totalorder %s29, 0
      %p117 = por %p115, %p116
      %s119 = sadd.s32 %s118, 1
      %p122 = scmp.eq.s32.totalorder %s23, 1
      %p123 = scmp.ne.s32.totalorder %s118, %s120
      %p124 = scmp.eq.s32.totalorder %s23, 0
      %p125 = por %p123, %p124
      %p126 = scmp.ne.s32.totalorder %s118, %s120
      %p127 = scmp.eq.s32.totalorder %s28, 1
      %p128 = por %p126, %p127
      %p129 = scmp.ne.s32.totalorder %s120, %s121
      %p130 = scmp.eq.s32.totalorder %s28, 0
      %p131 = por %p129, %p130
      %p132 = scmp.ne.s32.totalorder %s120, %s121
      %p133 = scmp.eq.s32.totalorder %s29, 1
      %p134 = por %p132, %p133
      %p136 = scmp.ne.s32.totalorder %s121, %s135
      %p137 = scmp.eq.s32.totalorder %s29, 0
      %p138 = por %p136, %p137
      %s140 = sadd.s32 %s139, 1
      %p143 = scmp.eq.s32.totalorder %s23, 1
      %p144 = scmp.ne.s32.totalorder %s139, %s141
      %p145 = scmp.eq.s32.totalorder %s23, 0
      %p146 = por %p144, %p145
      %p147 = scmp.ne.s32.totalorder %s139, %s141
      %p148 = scmp.eq.s32.totalorder %s28, 1
      %p149 = por %p147, %p148
      %p150 = scmp.ne.s32.totalorder %s141, %s142
      %p151 = scmp.eq.s32.totalorder %s28, 0
      %p152 = por %p150, %p151
      %p153 = scmp.ne.s32.totalorder %s141, %s142
      %p154 = scmp.eq.s32.totalorder %s29, 1
      %p155 = por %p153, %p154
      %p157 = scmp.ne.s32.totalorder %s142, %s156
      %p158 = scmp.eq.s32.totalorder %s29, 0
      %p159 = por %p157, %p158
      %s161 = sadd.s32 %s160, 1
      %p164 = scmp.eq.s32.totalorder %s23, 1
      %p165 = scmp.ne.s32.totalorder %s160, %s162
      %p166 = scmp.eq.s32.totalorder %s23, 0
      %p167 = por %p165, %p166
      %p168 = scmp.ne.s32.totalorder %s160, %s162
      %p169 = scmp.eq.s32.totalorder %s28, 1
      %p170 = por %p168, %p169
      %p171 = scmp.ne.s32.totalorder %s162, %s163
      %p172 = scmp.eq.s32.totalorder %s28, 0
      %p173 = por %p171, %p172
      %p174 = scmp.ne.s32.totalorder %s162, %s163
      %p175 = scmp.eq.s32.totalorder %s29, 1
      %p176 = por %p174, %p175
      %p178 = scmp.ne.s32.totalorder %s163, %s177
      %p179 = scmp.eq.s32.totalorder %s29, 0
      %p180 = por %p178, %p179
      %s182 = sadd.s32 %s181, 1
      %p185 = scmp.eq.s32.totalorder %s23, 1
      %p186 = scmp.ne.s32.totalorder %s181, %s183
      %p187 = scmp.eq.s32.totalorder %s23, 0
      %p188 = por %p186, %p187
      %p189 = scmp.ne.s32.totalorder %s181, %s183
      %p190 = scmp.eq.s32.totalorder %s28, 1
      %p191 = por %p189, %p190
      %p192 = scmp.ne.s32.totalorder %s183, %s184
      %p193 = scmp.eq.s32.totalorder %s28, 0
      %p194 = por %p192, %p193
      %p195 = scmp.ne.s32.totalorder %s183, %s184
      %p196 = scmp.eq.s32.totalorder %s29, 1
      %p197 = por %p195, %p196
      %p199 = scmp.ne.s32.totalorder %s184, %s198
      %p200 = scmp.eq.s32.totalorder %s29, 0
      %p201 = por %p199, %p200
      %s203 = sadd.s32 %s202, 1
      %p206 = scmp.eq.s32.totalorder %s23, 1
      %p207 = scmp.ne.s32.totalorder %s202, %s204
      %p208 = scmp.eq.s32.totalorder %s23, 0
      %p209 = por %p207, %p208
      %p210 = scmp.ne.s32.totalorder %s202, %s204
      %p211 = scmp.eq.s32.totalorder %s28, 1
      %p212 = por %p210, %p211
      %p213 = scmp.ne.s32.totalorder %s204, %s205
      %p214 = scmp.eq.s32.totalorder %s28, 0
      %p215 = por %p213, %p214
      %p216 = scmp.ne.s32.totalorder %s204, %s205
      %p217 = scmp.eq.s32.totalorder %s29, 1
      %p218 = por %p216, %p217
      %p220 = scmp.ne.s32.totalorder %s205, %s219
      %p221 = scmp.eq.s32.totalorder %s29, 0
      %p222 = por %p220, %p221
      %s224 = sadd.s32 %s223, 1
      %p227 = scmp.eq.s32.totalorder %s23, 1
      %p228 = scmp.ne.s32.totalorder %s223, %s225
      %p229 = scmp.eq.s32.totalorder %s23, 0
      %p230 = por %p228, %p229
      %p231 = scmp.ne.s32.totalorder %s223, %s225
      %p232 = scmp.eq.s32.totalorder %s28, 1
      %p233 = por %p231, %p232
      %p234 = scmp.ne.s32.totalorder %s225, %s226
      %p235 = scmp.eq.s32.totalorder %s28, 0
      %p236 = por %p234, %p235
      %p237 = scmp.ne.s32.totalorder %s225, %s226
      %p238 = scmp.eq.s32.totalorder %s29, 1
      %p239 = por %p237, %p238
      %p241 = scmp.ne.s32.totalorder %s226, %s240
      %p242 = scmp.eq.s32.totalorder %s29, 0
      %p243 = por %p241, %p242
      %s245 = sadd.s32 %s244, 1
      %p248 = scmp.eq.s32.totalorder %s23, 1
      %p249 = scmp.ne.s32.totalorder %s244, %s246
      %p250 = scmp.eq.s32.totalorder %s23, 0
      %p251 = por %p249, %p250
      %p252 = scmp.ne.s32.totalorder %s244, %s246
      %p253 = scmp.eq.s32.totalorder %s28, 1
      %p254 = por %p252, %p253
      %p255 = scmp.ne.s32.totalorder %s246, %s247
      %p256 = scmp.eq.s32.totalorder %s28, 0
      %p257 = por %p255, %p256
      %p258 = scmp.ne.s32.totalorder %s246, %s247
      %p259 = scmp.eq.s32.totalorder %s29, 1
      %p260 = por %p258, %p259
      %p262 = scmp.ne.s32.totalorder %s247, %s261
      %p263 = scmp.eq.s32.totalorder %s29, 0
      %p264 = por %p262, %p263
      %s266 = sadd.s32 %s265, 1
      %p269 = scmp.eq.s32.totalorder %s23, 1
      %p270 = scmp.ne.s32.totalorder %s265, %s267
      %p271 = scmp.eq.s32.totalorder %s23, 0
      %p272 = por %p270, %p271
      %p273 = scmp.ne.s32.totalorder %s265, %s267
      %p274 = scmp.eq.s32.totalorder %s28, 1
      %p275 = por %p273, %p274
      %p276 = scmp.ne.s32.totalorder %s267, %s268
      %p277 = scmp.eq.s32.totalorder %s28, 0
      %p278 = por %p276, %p277
      %p279 = scmp.ne.s32.totalorder %s267, %s268
      %p280 = scmp.eq.s32.totalorder %s29, 1
      %p281 = por %p279, %p280
      %p283 = scmp.ne.s32.totalorder %s268, %s282
      %p284 = scmp.eq.s32.totalorder %s29, 0
      %p285 = por %p283, %p284
      %s287 = sadd.s32 %s286, 1
      %p290 = scmp.eq.s32.totalorder %s23, 1
      %p291 = scmp.ne.s32.totalorder %s286, %s288
      %p292 = scmp.eq.s32.totalorder %s23, 0
      %p293 = por %p291, %p292
      %p294 = scmp.ne.s32.totalorder %s286, %s288
      %p295 = scmp.eq.s32.totalorder %s28, 1
      %p296 = por %p294, %p295
      %p297 = scmp.ne.s32.totalorder %s288, %s289
      %p298 = scmp.eq.s32.totalorder %s28, 0
      %p299 = por %p297, %p298
      %p300 = scmp.ne.s32.totalorder %s288, %s289
      %p301 = scmp.eq.s32.totalorder %s29, 1
      %p302 = por %p300, %p301
      %p304 = scmp.ne.s32.totalorder %s289, %s303
      %p305 = scmp.eq.s32.totalorder %s29, 0
      %p306 = por %p304, %p305
      %s308 = sadd.s32 %s307, 1
      %p311 = scmp.eq.s32.totalorder %s23, 1
      %p312 = scmp.ne.s32.totalorder %s307, %s309
      %p313 = scmp.eq.s32.totalorder %s23, 0
      %p314 = por %p312, %p313
      %p315 = scmp.ne.s32.totalorder %s307, %s309
      %p316 = scmp.eq.s32.totalorder %s28, 1
      %p317 = por %p315, %p316
      %p318 = scmp.ne.s32.totalorder %s309, %s310
      %p319 = scmp.eq.s32.totalorder %s28, 0
      %p320 = por %p318, %p319
      %p321 = scmp.ne.s32.totalorder %s309, %s310
      %p322 = scmp.eq.s32.totalorder %s29, 1
      %p323 = por %p321, %p322
      %p325 = scmp.ne.s32.totalorder %s310, %s324
      %p326 = scmp.eq.s32.totalorder %s29, 0
      %p327 = por %p325, %p326
      %s328 = ssub.s32 %s30, %s42
      %p329 = scmp.eq.s32.totalorder %s328, 0
      %s331 = sadd.s32 %s330, 1
      %s332 = scalar_select %p329, %s330, %s331
      %p335 = pneg %p329
      %p336 = scmp.eq.s32.totalorder %s23, 1
      %p337 = por %p335, %p336
      %p338 = scmp.ne.s32.totalorder %s330, %s333
      %p339 = scmp.eq.s32.totalorder %s23, 0
      %p340 = por %p338, %p339
      %p341 = scmp.ne.s32.totalorder %s330, %s333
      %p342 = scmp.eq.s32.totalorder %s28, 1
      %p343 = por %p341, %p342
      %p344 = scmp.ne.s32.totalorder %s333, %s334
      %p345 = scmp.eq.s32.totalorder %s28, 0
      %p346 = por %p344, %p345
      %p347 = scmp.ne.s32.totalorder %s333, %s334
      %p348 = scmp.eq.s32.totalorder %s29, 1
      %p349 = por %p347, %p348
      %p351 = scmp.ne.s32.totalorder %s334, %s350
      %p352 = scmp.eq.s32.totalorder %s29, 0
      %p353 = por %p351, %p352
      %p354 = scmp.le.s32.totalorder 1, %s23
      %p355 = scmp.lt.s32.totalorder %s23, 3
      %p356 = pnand %p354, %p355
      %p357 = pneg %p356
      // Predicated region
      $region9: #{tpu_custom_call.1} parent=5 // pred_check
        _
      $region10: #{tpu_custom_call.1} parent=5 // pred_check_branch
        %359 = sbr.rel (%p356) target = $region12
      $region11: #{tpu_custom_call.1} parent=5 // pred_region
        %s360 = ssub.s32 %s23, 1
        // Predicated region
        $region13: #{tpu_custom_call.1} parent=11 // pred_check
          %p361 = pneg %p89
        $region14: #{tpu_custom_call.1} parent=11 // pred_check_branch
          %363 = sbr.rel (%p361) target = $region16
        $region15: #{tpu_custom_call.1} parent=11 // pred_region
          %365 = vsyncadd [#allocation6], 0
          %s366 = smul.addr %s32, 2
          %s367 = scalar_lea.hbm %s1, %s366
          %s369 = sshll.u32 %s367, 4
          %s370 = int_to_ptr.hbm [resolvable:$true] %s369
          %s371 = sshll.u32 [#allocation5], 4
          %s372 = int_to_ptr.vmem [resolvable:$true] %s371
          %374 = dma.hbm_to_vmem [thread:$0]  %s370, 32, %s372, [#allocation6]
        $region16: #{tpu_custom_call.1} parent=11 // pred_fallthru
          _
        // Predicated region
        $region17: #{tpu_custom_call.1} parent=11 // pred_check
          %p375 = pneg %p110
        $region18: #{tpu_custom_call.1} parent=11 // pred_check_branch
          %377 = sbr.rel (%p375) target = $region20
        $region19: #{tpu_custom_call.1} parent=11 // pred_region
          _
        $region20: #{tpu_custom_call.1} parent=11 // pred_fallthru
          _
        // Predicated region
        $region21: #{tpu_custom_call.1} parent=11 // pred_check
          %p378 = pneg %p131
        $region22: #{tpu_custom_call.1} parent=11 // pred_check_branch
          %380 = sbr.rel (%p378) target = $region24
        $region23: #{tpu_custom_call.1} parent=11 // pred_region
          _
        $region24: #{tpu_custom_call.1} parent=11 // pred_fallthru
          _
        // Predicated region
        $region25: #{tpu_custom_call.1} parent=11 // pred_check
          %p381 = pneg %p152
        $region26: #{tpu_custom_call.1} parent=11 // pred_check_branch
          %383 = sbr.rel (%p381) target = $region28
        $region27: #{tpu_custom_call.1} parent=11 // pred_region
          %385 = vsyncadd [#allocation8], 0
          %s386 = sshll.u32 %s4, 4
          %s387 = int_to_ptr.hbm [resolvable:$true] %s386
          %s388 = sshll.u32 [#allocation7], 4
          %s389 = int_to_ptr.vmem [resolvable:$true] %s388
          %394 = dma.hbm_to_vmem [thread:$0]  %s387, 32768, %s389, [#allocation8], 512, 512, 32
        $region28: #{tpu_custom_call.1} parent=11 // pred_fallthru
          _
        // Predicated region
        $region29: #{tpu_custom_call.1} parent=11 // pred_check
          %p395 = pneg %p173
        $region30: #{tpu_custom_call.1} parent=11 // pred_check_branch
          %397 = sbr.rel (%p395) target = $region32
        $region31: #{tpu_custom_call.1} parent=11 // pred_region
          _
        $region32: #{tpu_custom_call.1} parent=11 // pred_fallthru
          _
        // Predicated region
        $region33: #{tpu_custom_call.1} parent=11 // pred_check
          %p398 = pneg %p194
        $region34: #{tpu_custom_call.1} parent=11 // pred_check_branch
          %400 = sbr.rel (%p398) target = $region36
        $region35: #{tpu_custom_call.1} parent=11 // pred_region
          %402 = vsyncadd [#allocation8], 0
          %s403 = sshll.u32 %s6, 4
          %s404 = int_to_ptr.hbm [resolvable:$true] %s403
          %s405 = sshll.u32 [#allocation9], 4
          %s406 = int_to_ptr.vmem [resolvable:$true] %s405
          %411 = dma.hbm_to_vmem [thread:$0]  %s404, 8192, %s406, [#allocation8], 512, 512, 32
        $region36: #{tpu_custom_call.1} parent=11 // pred_fallthru
          _
        // Predicated region
        $region37: #{tpu_custom_call.1} parent=11 // pred_check
          %p412 = pneg %p215
        $region38: #{tpu_custom_call.1} parent=11 // pred_check_branch
          %414 = sbr.rel (%p412) target = $region40
        $region39: #{tpu_custom_call.1} parent=11 // pred_region
          _
        $region40: #{tpu_custom_call.1} parent=11 // pred_fallthru
          _
        // Predicated region
        $region41: #{tpu_custom_call.1} parent=11 // pred_check
          %p415 = pneg %p236
        $region42: #{tpu_custom_call.1} parent=11 // pred_check_branch
          %417 = sbr.rel (%p415) target = $region44
        $region43: #{tpu_custom_call.1} parent=11 // pred_region
          %419 = vsyncadd [#allocation11], 0
          %s420 = sshll.u32 %s8, 4
          %s421 = int_to_ptr.hbm [resolvable:$true] %s420
          %s422 = sshll.u32 [#allocation10], 4
          %s423 = int_to_ptr.vmem [resolvable:$true] %s422
          %428 = dma.hbm_to_vmem [thread:$0]  %s421, 16384, %s423, [#allocation11], 256, 256, 16
        $region44: #{tpu_custom_call.1} parent=11 // pred_fallthru
          _
        // Predicated region
        $region45: #{tpu_custom_call.1} parent=11 // pred_check
          %p429 = pneg %p257
        $region46: #{tpu_custom_call.1} parent=11 // pred_check_branch
          %431 = sbr.rel (%p429) target = $region48
        $region47: #{tpu_custom_call.1} parent=11 // pred_region
          _
        $region48: #{tpu_custom_call.1} parent=11 // pred_fallthru
          _
        // Predicated region
        $region49: #{tpu_custom_call.1} parent=11 // pred_check
          %p432 = pneg %p278
        $region50: #{tpu_custom_call.1} parent=11 // pred_check_branch
          %434 = sbr.rel (%p432) target = $region52
        $region51: #{tpu_custom_call.1} parent=11 // pred_region
          _
        $region52: #{tpu_custom_call.1} parent=11 // pred_fallthru
          _
        // Predicated region
        $region53: #{tpu_custom_call.1} parent=11 // pred_check
          %p435 = pneg %p299
        $region54: #{tpu_custom_call.1} parent=11 // pred_check_branch
          %437 = sbr.rel (%p435) target = $region56
        $region55: #{tpu_custom_call.1} parent=11 // pred_region
          _
        $region56: #{tpu_custom_call.1} parent=11 // pred_fallthru
          _
        // Predicated region
        $region57: #{tpu_custom_call.1} parent=11 // pred_check
          %p438 = pneg %p320
        $region58: #{tpu_custom_call.1} parent=11 // pred_check_branch
          %440 = sbr.rel (%p438) target = $region60
        $region59: #{tpu_custom_call.1} parent=11 // pred_region
          _
        $region60: #{tpu_custom_call.1} parent=11 // pred_fallthru
          _
      $region12: #{tpu_custom_call.1} parent=5 // pred_fallthru
        _
      %p441 = scmp.lt.s32.totalorder %s23, 2
      // Predicated region
      $region61: #{tpu_custom_call.1} parent=5 // pred_check
        %p442 = pneg %p441
      $region62: #{tpu_custom_call.1} parent=5 // pred_check_branch
        %444 = sbr.rel (%p442) target = $region64
      $region63: #{tpu_custom_call.1} parent=5 // pred_region
        // Predicated region
        $region65: #{tpu_custom_call.1} parent=63 // pred_check
          %p445 = pneg %p57
        $region66: #{tpu_custom_call.1} parent=63 // pred_check_branch
          %447 = sbr.rel (%p445) target = $region68
        $region67: #{tpu_custom_call.1} parent=63 // pred_region
          %s448 = sand.u32 %s47, 1
          %s449 = sand.u32 %s47, 1
          %s450 = smul.addr %s449, 8
          %s451 = scalar_lea.vmem [#allocation4], %s450
          %s452 = smul.u32 2, %s30
          %s453 = smul.addr %s452, 2
          %s454 = sadd.s32 %s31, %s453
          %s455 = smul.addr %s454, 4
          %s456 = scalar_lea.vmem %s0, %s455
          // Predicated region
          $region69: #{tpu_custom_call.1} parent=67 // pred_check
            _
          $region70: #{tpu_custom_call.1} parent=67 // pred_check_branch
            %458 = sbr.rel (0) target = $region72
          $region71: #{tpu_custom_call.1} parent=67 // pred_region
            // Predicated region
            $region73: #{tpu_custom_call.1} parent=71 // pred_check
              _
            $region74: #{tpu_custom_call.1} parent=71 // pred_check_branch
              %460 = sbr.rel target = $region76
            $region75: #{tpu_custom_call.1} parent=71 // pred_region
              // Predicated region
              $region88: #{tpu_custom_call.1} parent=75 // pred_check
                _
              $region89: #{tpu_custom_call.1} parent=75 // pred_check_branch
                %478 = sbr.rel (0) target = $region91
              $region90: #{tpu_custom_call.1} parent=75 // pred_region
                loop: start=0, step=1, limit=1
                $region92: #{tpu_custom_call.1} parent=90 // loop_pre_header
                  _
                $region93: #{tpu_custom_call.1} parent=90 // loop_header
                  %s480 = sphi 0, %s484
                  %p481 = scmp.ge.s32.totalorder %s480, 1
                  %s485 = sphi %s456, %s456
                  %s486 = sphi %s451, %s451
                $region94: #{tpu_custom_call.1} parent=90 // loop_header_branch
                  %483 = sbr.rel (%p481) target = $region98
                $region95: #{tpu_custom_call.1} parent=90 // loop_body
                  _
                $region96: #{tpu_custom_call.1} parent=90 // loop_footer
                  %s484 = sadd.s32 1, %s480
                $region97: #{tpu_custom_call.1} parent=90 // loop_footer_branch
                  %479 = sbr.rel target = $region93
                $region98: #{tpu_custom_call.1} parent=90 // loop_exit
                  _
                %s488 = ssub.s32 16, 1
                loop: start=0, step=1, limit=1
                $region99: #{tpu_custom_call.1} parent=90 // loop_pre_header
                  _
                $region100: #{tpu_custom_call.1} parent=90 // loop_header
                  %s490 = sphi 0, %s494
                  %p491 = scmp.ge.s32.totalorder %s490, 1
                  %s495 = sphi %s456, %s456
                  %s496 = sphi %s451, %s451
                $region101: #{tpu_custom_call.1} parent=90 // loop_header_branch
                  %493 = sbr.rel (%p491) target = $region105
                $region102: #{tpu_custom_call.1} parent=90 // loop_body
                  %v497 = vld [vmem:[%s495] sm:%s488]
                  %498 = vst [vmem:[%s496] sm:%s488] %v497
                  %v499 = vld [vmem:[%s495 + $0x8] sm:%s488]
                  %500 = vst [vmem:[%s496 + $0x4] sm:%s488] %v499
                $region103: #{tpu_custom_call.1} parent=90 // loop_footer
                  %s494 = sadd.s32 1, %s490
                $region104: #{tpu_custom_call.1} parent=90 // loop_footer_branch
                  %489 = sbr.rel target = $region100
                $region105: #{tpu_custom_call.1} parent=90 // loop_exit
                  _
              $region91: #{tpu_custom_call.1} parent=75 // pred_fallthru
                _
            $region76: #{tpu_custom_call.1} parent=71 // pred_fallthru
              _
            // Predicated region
            $region77: #{tpu_custom_call.1} parent=71 // pred_check
              _
            $region78: #{tpu_custom_call.1} parent=71 // pred_check_branch
              %462 = sbr.rel (0) target = $region80
            $region79: #{tpu_custom_call.1} parent=71 // pred_region
              %s464 = ssub.s32 16, 1
              loop: start=0, step=1, limit=1
              $region81: #{tpu_custom_call.1} parent=79 // loop_pre_header
                _
              $region82: #{tpu_custom_call.1} parent=79 // loop_header
                %s466 = sphi 0, %s470
                %p467 = scmp.ge.s32.totalorder %s466, 1
                %s471 = sphi %s456, %s456
                %s472 = sphi %s451, %s451
              $region83: #{tpu_custom_call.1} parent=79 // loop_header_branch
                %469 = sbr.rel (%p467) target = $region87
              $region84: #{tpu_custom_call.1} parent=79 // loop_body
                %v473 = vld [vmem:[%s471] sm:%s464]
                %474 = vst [vmem:[%s472] sm:%s464] %v473
                %v475 = vld [vmem:[%s471 + $0x8] sm:%s464]
                %476 = vst [vmem:[%s472 + $0x4] sm:%s464] %v475
              $region85: #{tpu_custom_call.1} parent=79 // loop_footer
                %s470 = sadd.s32 1, %s466
              $region86: #{tpu_custom_call.1} parent=79 // loop_footer_branch
                %465 = sbr.rel target = $region82
              $region87: #{tpu_custom_call.1} parent=79 // loop_exit
                _
            $region80: #{tpu_custom_call.1} parent=71 // pred_fallthru
              _
          $region72: #{tpu_custom_call.1} parent=67 // pred_fallthru
            _
          %501 = vnop
        $region68: #{tpu_custom_call.1} parent=63 // pred_fallthru
          _
      $region64: #{tpu_custom_call.1} parent=5 // pred_fallthru
        _
      %p502 = scmp.le.s32.totalorder 1, %s23
      %p503 = scmp.lt.s32.totalorder %s23, 3
      %p504 = pnand %p502, %p503
      %p505 = pneg %p504
      // Predicated region
      $region106: #{tpu_custom_call.1} parent=5 // pred_check
        _
      $region107: #{tpu_custom_call.1} parent=5 // pred_check_branch
        %507 = sbr.rel (%p504) target = $region109
      $region108: #{tpu_custom_call.1} parent=5 // pred_region
        %s508 = ssub.s32 %s23, 1
        %s509 = sand.u32 %s50, 1
        %s510 = sand.u32 %s50, 1
        %s511 = smul.addr %s510, 8
        %s512 = scalar_lea.vmem [#allocation4], %s511
        // Predicated region
        $region110: #{tpu_custom_call.1} parent=108 // pred_check
          %p513 = pneg %p63
        $region111: #{tpu_custom_call.1} parent=108 // pred_check_branch
          %515 = sbr.rel (%p513) target = $region113
        $region112: #{tpu_custom_call.1} parent=108 // pred_region
          _
        $region113: #{tpu_custom_call.1} parent=108 // pred_fallthru
          _
        // Predicated region
        $region114: #{tpu_custom_call.1} parent=108 // pred_check
          %p516 = pneg %p89
        $region115: #{tpu_custom_call.1} parent=108 // pred_check_branch
          %518 = sbr.rel (%p516) target = $region117
        $region116: #{tpu_custom_call.1} parent=108 // pred_region
          %520 = dma.done [#allocation6], 32
        $region117: #{tpu_custom_call.1} parent=108 // pred_fallthru
          _
        // Predicated region
        $region118: #{tpu_custom_call.1} parent=108 // pred_check
          %p521 = pneg %p152
        $region119: #{tpu_custom_call.1} parent=108 // pred_check_branch
          %523 = sbr.rel (%p521) target = $region121
        $region120: #{tpu_custom_call.1} parent=108 // pred_region
          %525 = dma.done [#allocation8], 32768
        $region121: #{tpu_custom_call.1} parent=108 // pred_fallthru
          _
        // Predicated region
        $region122: #{tpu_custom_call.1} parent=108 // pred_check
          %p526 = pneg %p194
        $region123: #{tpu_custom_call.1} parent=108 // pred_check_branch
          %528 = sbr.rel (%p526) target = $region125
        $region124: #{tpu_custom_call.1} parent=108 // pred_region
          %530 = dma.done [#allocation8], 8192
        $region125: #{tpu_custom_call.1} parent=108 // pred_fallthru
          _
        // Predicated region
        $region126: #{tpu_custom_call.1} parent=108 // pred_check
          %p531 = pneg %p236
        $region127: #{tpu_custom_call.1} parent=108 // pred_check_branch
          %533 = sbr.rel (%p531) target = $region129
        $region128: #{tpu_custom_call.1} parent=108 // pred_region
          %535 = dma.done [#allocation11], 16384
        $region129: #{tpu_custom_call.1} parent=108 // pred_fallthru
          _
        %s536 = sand.u32 %s50, 1
        %s537 = sand.u32 %s50, 1
        %s538 = smul.addr %s537, 8
        %s539 = scalar_lea.vmem [#allocation4], %s538
        %p540 = pneg %p63
        %p541 = pneg %p60
        %p542 = pneg %p89
        %p543 = pneg %p86
        %p544 = pneg %p110
        %p545 = pneg %p107
        %p546 = pneg %p131
        %p547 = pneg %p128
        %p548 = pneg %p152
        %p549 = pneg %p149
        %p550 = pneg %p173
        %p551 = pneg %p170
        %p552 = pneg %p194
        %p553 = pneg %p191
        %p554 = pneg %p215
        %p555 = pneg %p212
        %p556 = pneg %p236
        %p557 = pneg %p233
        %p558 = pneg %p257
        %p559 = pneg %p254
        %p560 = pneg %p278
        %p561 = pneg %p275
        %p562 = pneg %p299
        %p563 = pneg %p296
        %p564 = pneg %p320
        %p565 = pneg %p317
        %p566 = pneg %p346
        %p567 = pneg %p343
        %p568 = scmp.lt.s32.totalorder %s32, 0
        %s569 = scalar_select %p568, %s32, 0
        %s570 = smul.addr %s569, 2
        %s571 = scalar_lea.vmem %s13, %s570
        %s572 = smul.u32 2, %s32
        %p573 = scmp.lt.s32.totalorder %s32, 0
        %s574 = scalar_select %p573, %s32, 0
        %s575 = smul.addr %s574, 2
        %s576 = scalar_lea.vmem %s13, %s575
        %p577 = scmp.eq.s32.totalorder %s33, 0
        // Predicated region
        $region130: #{tpu_custom_call.1} parent=108 // pred_check
          %p578 = pneg %p577
        $region131: #{tpu_custom_call.1} parent=108 // pred_check_branch
          %580 = sbr.rel (%p578) target = $region133
        $region132: #{tpu_custom_call.1} parent=108 // pred_region
          %vm581 = vcmask 17408
          %582 = vst.msk [vmem:[#allocation2] sm:$0x3] %vm581, 0.0
        $region133: #{tpu_custom_call.1} parent=108 // pred_fallthru
          _
        %v583 = vld [vmem:[#allocation2] sm:$0x3]
        %v584 = vld [vmem:[%s512] sm:$0x7]
        %v585 = vld [vmem:[%s512 + $0x4] sm:$0x7]
        %vm586 = vcmask 1042432
        %v587 = vsel %vm586, %v584, 0.0
        %588 = vadd.xlane.f32.xlu0 %v587
        %v589 = vpop.xlane.xlu0 %588
        %v590 = vsel %vm586, %v585, 0.0
        %591 = vadd.xlane.f32.xlu0 %v590
        %v592 = vpop.xlane.xlu0 %591
        %v595 = vlaneseq
        %v596 = vand.u32 %v595, 127
        %v597 = vperm.slane %v589, %v596
        %v598 = vperm.slane %v592, %v596
        %vm599 = vcmask 1041409
        %v600 = vsel %vm599, %v598, %v597
        %v602 = vadd.f32 %v583, %v600
        %vm603 = vcmask 17408
        %604 = vst.msk [vmem:[#allocation2] sm:$0x3] %vm603, %v602
        %p605 = scmp.eq.s32.totalorder %s33, 1
        // Predicated region
        $region134: #{tpu_custom_call.1} parent=108 // pred_check
          %p606 = pneg %p605
        $region135: #{tpu_custom_call.1} parent=108 // pred_check_branch
          %608 = sbr.rel (%p606) target = $region137
        $region136: #{tpu_custom_call.1} parent=108 // pred_region
          %v609 = vld [vmem:[#allocation2] sm:$0x3]
          %v610 = vmul.f32 %v609, 0.00390625
          %v611 = vld [vmem:[%s3] sm:$0xf]
          %v612 = vld [vmem:[%s2] ss:$4 sm:$0xf]
          %614 = vset.pattern.permute.xlu0 0
          %615 = vperm.xlu0 %614, %v610
          %v616 = vpop.permute.xlu0 %615
          %v619 = vperm.slane %v612, 0
          %v620 = vperm.slane %v612, 1
          %v621 = vperm.slane %v612, 2
          %v622 = vperm.slane %v612, 3
          %v627 = vmul.f32 %v616, %v619
          %v628 = vmul.f32 %v616, %v620
          %v629 = vmul.f32 %v616, %v621
          %v630 = vmul.f32 %v616, %v622
          %v632 = vperm.slane %v611, 0
          %v633 = vperm.slane %v611, 1
          %v634 = vperm.slane %v611, 2
          %v635 = vperm.slane %v611, 3
          %v640 = vadd.f32 %v632, %v627
          %v641 = vadd.f32 %v633, %v628
          %v642 = vadd.f32 %v634, %v629
          %v643 = vadd.f32 %v635, %v630
          %s644 = scalar_lea.vmem %s2, 1
          %v645 = vld [vmem:[%s644] ss:$4 sm:$0xf]
          %646 = vset.pattern.permute.xlu0 1
          %647 = vperm.xlu0 %646, %v610
          %v648 = vpop.permute.xlu0 %647
          %v651 = vperm.slane %v645, 0
          %v652 = vperm.slane %v645, 1
          %v653 = vperm.slane %v645, 2
          %v654 = vperm.slane %v645, 3
          %v659 = vmul.f32 %v648, %v651
          %v660 = vmul.f32 %v648, %v652
          %v661 = vmul.f32 %v648, %v653
          %v662 = vmul.f32 %v648, %v654
          %v663 = vadd.f32 %v640, %v659
          %v664 = vadd.f32 %v641, %v660
          %v665 = vadd.f32 %v642, %v661
          %v666 = vadd.f32 %v643, %v662
          %s667 = scalar_lea.vmem %s2, 2
          %v668 = vld [vmem:[%s667] ss:$4 sm:$0xf]
          %669 = vset.pattern.permute.xlu0 2
          %670 = vperm.xlu0 %669, %v610
          %v671 = vpop.permute.xlu0 %670
          %v674 = vperm.slane %v668, 0
          %v675 = vperm.slane %v668, 1
          %v676 = vperm.slane %v668, 2
          %v677 = vperm.slane %v668, 3
          %v682 = vmul.f32 %v671, %v674
          %v683 = vmul.f32 %v671, %v675
          %v684 = vmul.f32 %v671, %v676
          %v685 = vmul.f32 %v671, %v677
          %v686 = vadd.f32 %v663, %v682
          %v687 = vadd.f32 %v664, %v683
          %v688 = vadd.f32 %v665, %v684
          %v689 = vadd.f32 %v666, %v685
          %v690 = vmax.f32 %v686, 0.0
          %v691 = vmax.f32 %v687, 0.0
          %v692 = vmax.f32 %v688, 0.0
          %v693 = vmax.f32 %v689, 0.0
          %v694 = vld [vmem:[#allocation7] sm:$0xff]
          %v695 = vld [vmem:[#allocation7 + $0x8] sm:$0xff]
          %v696 = vld [vmem:[#allocation7 + $0x10] sm:$0xff]
          %v697 = vld [vmem:[#allocation7 + $0x18] sm:$0xff]
          %v698 = vld [vmem:[#allocation7 + $0x20] sm:$0xff]
          %v699 = vld [vmem:[#allocation7 + $0x28] sm:$0xff]
          %v700 = vld [vmem:[#allocation7 + $0x30] sm:$0xff]
          %v701 = vld [vmem:[#allocation7 + $0x38] sm:$0xff]
          %v702 = vld [vmem:[#allocation7 + $0x40] sm:$0xff]
          %v703 = vld [vmem:[#allocation7 + $0x48] sm:$0xff]
          %v704 = vld [vmem:[#allocation7 + $0x50] sm:$0xff]
          %v705 = vld [vmem:[#allocation7 + $0x58] sm:$0xff]
          %v706 = vld [vmem:[#allocation7 + $0x60] sm:$0xff]
          %v707 = vld [vmem:[#allocation7 + $0x68] sm:$0xff]
          %v708 = vld [vmem:[#allocation7 + $0x70] sm:$0xff]
          %v709 = vld [vmem:[#allocation7 + $0x78] sm:$0xff]
          %v710 = vld [vmem:[#allocation7 + $0x80] sm:$0xff]
          %v711 = vld [vmem:[#allocation7 + $0x88] sm:$0xff]
          %v712 = vld [vmem:[#allocation7 + $0x90] sm:$0xff]
          %v713 = vld [vmem:[#allocation7 + $0x98] sm:$0xff]
          %v714 = vld [vmem:[#allocation7 + $0xa0] sm:$0xff]
          %v715 = vld [vmem:[#allocation7 + $0xa8] sm:$0xff]
          %v716 = vld [vmem:[#allocation7 + $0xb0] sm:$0xff]
          %v717 = vld [vmem:[#allocation7 + $0xb8] sm:$0xff]
          %v718 = vld [vmem:[#allocation7 + $0xc0] sm:$0xff]
          %v719 = vld [vmem:[#allocation7 + $0xc8] sm:$0xff]
          %v720 = vld [vmem:[#allocation7 + $0xd0] sm:$0xff]
          %v721 = vld [vmem:[#allocation7 + $0xd8] sm:$0xff]
          %v722 = vld [vmem:[#allocation7 + $0xe0] sm:$0xff]
          %v723 = vld [vmem:[#allocation7 + $0xe8] sm:$0xff]
          %v724 = vld [vmem:[#allocation7 + $0xf0] sm:$0xff]
          %v725 = vld [vmem:[#allocation7 + $0xf8] sm:$0xff]
          %v726 = vld [vmem:[#allocation7 + $0x100] sm:$0xff]
          %v727 = vld [vmem:[#allocation7 + $0x108] sm:$0xff]
          %v728 = vld [vmem:[#allocation7 + $0x110] sm:$0xff]
          %v729 = vld [vmem:[#allocation7 + $0x118] sm:$0xff]
          %v730 = vld [vmem:[#allocation7 + $0x120] sm:$0xff]
          %v731 = vld [vmem:[#allocation7 + $0x128] sm:$0xff]
          %v732 = vld [vmem:[#allocation7 + $0x130] sm:$0xff]
          %v733 = vld [vmem:[#allocation7 + $0x138] sm:$0xff]
          %v734 = vld [vmem:[#allocation7 + $0x140] sm:$0xff]
          %v735 = vld [vmem:[#allocation7 + $0x148] sm:$0xff]
          %v736 = vld [vmem:[#allocation7 + $0x150] sm:$0xff]
          %v737 = vld [vmem:[#allocation7 + $0x158] sm:$0xff]
          %v738 = vld [vmem:[#allocation7 + $0x160] sm:$0xff]
          %v739 = vld [vmem:[#allocation7 + $0x168] sm:$0xff]
          %v740 = vld [vmem:[#allocation7 + $0x170] sm:$0xff]
          %v741 = vld [vmem:[#allocation7 + $0x178] sm:$0xff]
          %v742 = vld [vmem:[#allocation7 + $0x180] sm:$0xff]
          %v743 = vld [vmem:[#allocation7 + $0x188] sm:$0xff]
          %v744 = vld [vmem:[#allocation7 + $0x190] sm:$0xff]
          %v745 = vld [vmem:[#allocation7 + $0x198] sm:$0xff]
          %v746 = vld [vmem:[#allocation7 + $0x1a0] sm:$0xff]
          %v747 = vld [vmem:[#allocation7 + $0x1a8] sm:$0xff]
          %v748 = vld [vmem:[#allocation7 + $0x1b0] sm:$0xff]
          %v749 = vld [vmem:[#allocation7 + $0x1b8] sm:$0xff]
          %v750 = vld [vmem:[#allocation7 + $0x1c0] sm:$0xff]
          %v751 = vld [vmem:[#allocation7 + $0x1c8] sm:$0xff]
          %v752 = vld [vmem:[#allocation7 + $0x1d0] sm:$0xff]
          %v753 = vld [vmem:[#allocation7 + $0x1d8] sm:$0xff]
          %v754 = vld [vmem:[#allocation7 + $0x1e0] sm:$0xff]
          %v755 = vld [vmem:[#allocation7 + $0x1e8] sm:$0xff]
          %v756 = vld [vmem:[#allocation7 + $0x1f0] sm:$0xff]
          %v757 = vld [vmem:[#allocation7 + $0x1f8] sm:$0xff]
          %v758 = vld [vmem:[#allocation7 + $0x200] sm:$0xff]
          %v759 = vld [vmem:[#allocation7 + $0x208] sm:$0xff]
          %v760 = vld [vmem:[#allocation7 + $0x210] sm:$0xff]
          %v761 = vld [vmem:[#allocation7 + $0x218] sm:$0xff]
          %v762 = vld [vmem:[#allocation7 + $0x220] sm:$0xff]
          %v763 = vld [vmem:[#allocation7 + $0x228] sm:$0xff]
          %v764 = vld [vmem:[#allocation7 + $0x230] sm:$0xff]
          %v765 = vld [vmem:[#allocation7 + $0x238] sm:$0xff]
          %v766 = vld [vmem:[#allocation7 + $0x240] sm:$0xff]
          %v767 = vld [vmem:[#allocation7 + $0x248] sm:$0xff]
          %v768 = vld [vmem:[#allocation7 + $0x250] sm:$0xff]
          %v769 = vld [vmem:[#allocation7 + $0x258] sm:$0xff]
          %v770 = vld [vmem:[#allocation7 + $0x260] sm:$0xff]
          %v771 = vld [vmem:[#allocation7 + $0x268] sm:$0xff]
          %v772 = vld [vmem:[#allocation7 + $0x270] sm:$0xff]
          %v773 = vld [vmem:[#allocation7 + $0x278] sm:$0xff]
          %v774 = vld [vmem:[#allocation7 + $0x280] sm:$0xff]
          %v775 = vld [vmem:[#allocation7 + $0x288] sm:$0xff]
          %v776 = vld [vmem:[#allocation7 + $0x290] sm:$0xff]
          %v777 = vld [vmem:[#allocation7 + $0x298] sm:$0xff]
          %v778 = vld [vmem:[#allocation7 + $0x2a0] sm:$0xff]
          %v779 = vld [vmem:[#allocation7 + $0x2a8] sm:$0xff]
          %v780 = vld [vmem:[#allocation7 + $0x2b0] sm:$0xff]
          %v781 = vld [vmem:[#allocation7 + $0x2b8] sm:$0xff]
          %v782 = vld [vmem:[#allocation7 + $0x2c0] sm:$0xff]
          %v783 = vld [vmem:[#allocation7 + $0x2c8] sm:$0xff]
          %v784 = vld [vmem:[#allocation7 + $0x2d0] sm:$0xff]
          %v785 = vld [vmem:[#allocation7 + $0x2d8] sm:$0xff]
          %v786 = vld [vmem:[#allocation7 + $0x2e0] sm:$0xff]
          %v787 = vld [vmem:[#allocation7 + $0x2e8] sm:$0xff]
          %v788 = vld [vmem:[#allocation7 + $0x2f0] sm:$0xff]
          %v789 = vld [vmem:[#allocation7 + $0x2f8] sm:$0xff]
          %v790 = vld [vmem:[#allocation7 + $0x300] sm:$0xff]
          %v791 = vld [vmem:[#allocation7 + $0x308] sm:$0xff]
          %v792 = vld [vmem:[#allocation7 + $0x310] sm:$0xff]
          %v793 = vld [vmem:[#allocation7 + $0x318] sm:$0xff]
          %v794 = vld [vmem:[#allocation7 + $0x320] sm:$0xff]
          %v795 = vld [vmem:[#allocation7 + $0x328] sm:$0xff]
          %v796 = vld [vmem:[#allocation7 + $0x330] sm:$0xff]
          %v797 = vld [vmem:[#allocation7 + $0x338] sm:$0xff]
          %v798 = vld [vmem:[#allocation7 + $0x340] sm:$0xff]
          %v799 = vld [vmem:[#allocation7 + $0x348] sm:$0xff]
          %v800 = vld [vmem:[#allocation7 + $0x350] sm:$0xff]
          %v801 = vld [vmem:[#allocation7 + $0x358] sm:$0xff]
          %v802 = vld [vmem:[#allocation7 + $0x360] sm:$0xff]
          %v803 = vld [vmem:[#allocation7 + $0x368] sm:$0xff]
          %v804 = vld [vmem:[#allocation7 + $0x370] sm:$0xff]
          %v805 = vld [vmem:[#allocation7 + $0x378] sm:$0xff]
          %v806 = vld [vmem:[#allocation7 + $0x380] sm:$0xff]
          %v807 = vld [vmem:[#allocation7 + $0x388] sm:$0xff]
          %v808 = vld [vmem:[#allocation7 + $0x390] sm:$0xff]
          %v809 = vld [vmem:[#allocation7 + $0x398] sm:$0xff]
          %v810 = vld [vmem:[#allocation7 + $0x3a0] sm:$0xff]
          %v811 = vld [vmem:[#allocation7 + $0x3a8] sm:$0xff]
          %v812 = vld [vmem:[#allocation7 + $0x3b0] sm:$0xff]
          %v813 = vld [vmem:[#allocation7 + $0x3b8] sm:$0xff]
          %v814 = vld [vmem:[#allocation7 + $0x3c0] sm:$0xff]
          %v815 = vld [vmem:[#allocation7 + $0x3c8] sm:$0xff]
          %v816 = vld [vmem:[#allocation7 + $0x3d0] sm:$0xff]
          %v817 = vld [vmem:[#allocation7 + $0x3d8] sm:$0xff]
          %v818 = vld [vmem:[#allocation7 + $0x3e0] sm:$0xff]
          %v819 = vld [vmem:[#allocation7 + $0x3e8] sm:$0xff]
          %v820 = vld [vmem:[#allocation7 + $0x3f0] sm:$0xff]
          %v821 = vld [vmem:[#allocation7 + $0x3f8] sm:$0xff]
          %v822 = vld [vmem:[#allocation7 + $0x400] sm:$0xff]
          %v823 = vld [vmem:[#allocation7 + $0x408] sm:$0xff]
          %v824 = vld [vmem:[#allocation7 + $0x410] sm:$0xff]
          %v825 = vld [vmem:[#allocation7 + $0x418] sm:$0xff]
          %v826 = vld [vmem:[#allocation7 + $0x420] sm:$0xff]
          %v827 = vld [vmem:[#allocation7 + $0x428] sm:$0xff]
          %v828 = vld [vmem:[#allocation7 + $0x430] sm:$0xff]
          %v829 = vld [vmem:[#allocation7 + $0x438] sm:$0xff]
          %v830 = vld [vmem:[#allocation7 + $0x440] sm:$0xff]
          %v831 = vld [vmem:[#allocation7 + $0x448] sm:$0xff]
          %v832 = vld [vmem:[#allocation7 + $0x450] sm:$0xff]
          %v833 = vld [vmem:[#allocation7 + $0x458] sm:$0xff]
          %v834 = vld [vmem:[#allocation7 + $0x460] sm:$0xff]
          %v835 = vld [vmem:[#allocation7 + $0x468] sm:$0xff]
          %v836 = vld [vmem:[#allocation7 + $0x470] sm:$0xff]
          %v837 = vld [vmem:[#allocation7 + $0x478] sm:$0xff]
          %v838 = vld [vmem:[#allocation7 + $0x480] sm:$0xff]
          %v839 = vld [vmem:[#allocation7 + $0x488] sm:$0xff]
          %v840 = vld [vmem:[#allocation7 + $0x490] sm:$0xff]
          %v841 = vld [vmem:[#allocation7 + $0x498] sm:$0xff]
          %v842 = vld [vmem:[#allocation7 + $0x4a0] sm:$0xff]
          %v843 = vld [vmem:[#allocation7 + $0x4a8] sm:$0xff]
          %v844 = vld [vmem:[#allocation7 + $0x4b0] sm:$0xff]
          %v845 = vld [vmem:[#allocation7 + $0x4b8] sm:$0xff]
          %v846 = vld [vmem:[#allocation7 + $0x4c0] sm:$0xff]
          %v847 = vld [vmem:[#allocation7 + $0x4c8] sm:$0xff]
          %v848 = vld [vmem:[#allocation7 + $0x4d0] sm:$0xff]
          %v849 = vld [vmem:[#allocation7 + $0x4d8] sm:$0xff]
          %v850 = vld [vmem:[#allocation7 + $0x4e0] sm:$0xff]
          %v851 = vld [vmem:[#allocation7 + $0x4e8] sm:$0xff]
          %v852 = vld [vmem:[#allocation7 + $0x4f0] sm:$0xff]
          %v853 = vld [vmem:[#allocation7 + $0x4f8] sm:$0xff]
          %v854 = vld [vmem:[#allocation7 + $0x500] sm:$0xff]
          %v855 = vld [vmem:[#allocation7 + $0x508] sm:$0xff]
          %v856 = vld [vmem:[#allocation7 + $0x510] sm:$0xff]
          %v857 = vld [vmem:[#allocation7 + $0x518] sm:$0xff]
          %v858 = vld [vmem:[#allocation7 + $0x520] sm:$0xff]
          %v859 = vld [vmem:[#allocation7 + $0x528] sm:$0xff]
          %v860 = vld [vmem:[#allocation7 + $0x530] sm:$0xff]
          %v861 = vld [vmem:[#allocation7 + $0x538] sm:$0xff]
          %v862 = vld [vmem:[#allocation7 + $0x540] sm:$0xff]
          %v863 = vld [vmem:[#allocation7 + $0x548] sm:$0xff]
          %v864 = vld [vmem:[#allocation7 + $0x550] sm:$0xff]
          %v865 = vld [vmem:[#allocation7 + $0x558] sm:$0xff]
          %v866 = vld [vmem:[#allocation7 + $0x560] sm:$0xff]
          %v867 = vld [vmem:[#allocation7 + $0x568] sm:$0xff]
          %v868 = vld [vmem:[#allocation7 + $0x570] sm:$0xff]
          %v869 = vld [vmem:[#allocation7 + $0x578] sm:$0xff]
          %v870 = vld [vmem:[#allocation7 + $0x580] sm:$0xff]
          %v871 = vld [vmem:[#allocation7 + $0x588] sm:$0xff]
          %v872 = vld [vmem:[#allocation7 + $0x590] sm:$0xff]
          %v873 = vld [vmem:[#allocation7 + $0x598] sm:$0xff]
          %v874 = vld [vmem:[#allocation7 + $0x5a0] sm:$0xff]
          %v875 = vld [vmem:[#allocation7 + $0x5a8] sm:$0xff]
          %v876 = vld [vmem:[#allocation7 + $0x5b0] sm:$0xff]
          %v877 = vld [vmem:[#allocation7 + $0x5b8] sm:$0xff]
          %v878 = vld [vmem:[#allocation7 + $0x5c0] sm:$0xff]
          %v879 = vld [vmem:[#allocation7 + $0x5c8] sm:$0xff]
          %v880 = vld [vmem:[#allocation7 + $0x5d0] sm:$0xff]
          %v881 = vld [vmem:[#allocation7 + $0x5d8] sm:$0xff]
          %v882 = vld [vmem:[#allocation7 + $0x5e0] sm:$0xff]
          %v883 = vld [vmem:[#allocation7 + $0x5e8] sm:$0xff]
          %v884 = vld [vmem:[#allocation7 + $0x5f0] sm:$0xff]
          %v885 = vld [vmem:[#allocation7 + $0x5f8] sm:$0xff]
          %v886 = vld [vmem:[#allocation7 + $0x600] sm:$0xff]
          %v887 = vld [vmem:[#allocation7 + $0x608] sm:$0xff]
          %v888 = vld [vmem:[#allocation7 + $0x610] sm:$0xff]
          %v889 = vld [vmem:[#allocation7 + $0x618] sm:$0xff]
          %v890 = vld [vmem:[#allocation7 + $0x620] sm:$0xff]
          %v891 = vld [vmem:[#allocation7 + $0x628] sm:$0xff]
          %v892 = vld [vmem:[#allocation7 + $0x630] sm:$0xff]
          %v893 = vld [vmem:[#allocation7 + $0x638] sm:$0xff]
          %v894 = vld [vmem:[#allocation7 + $0x640] sm:$0xff]
          %v895 = vld [vmem:[#allocation7 + $0x648] sm:$0xff]
          %v896 = vld [vmem:[#allocation7 + $0x650] sm:$0xff]
          %v897 = vld [vmem:[#allocation7 + $0x658] sm:$0xff]
          %v898 = vld [vmem:[#allocation7 + $0x660] sm:$0xff]
          %v899 = vld [vmem:[#allocation7 + $0x668] sm:$0xff]
          %v900 = vld [vmem:[#allocation7 + $0x670] sm:$0xff]
          %v901 = vld [vmem:[#allocation7 + $0x678] sm:$0xff]
          %v902 = vld [vmem:[#allocation7 + $0x680] sm:$0xff]
          %v903 = vld [vmem:[#allocation7 + $0x688] sm:$0xff]
          %v904 = vld [vmem:[#allocation7 + $0x690] sm:$0xff]
          %v905 = vld [vmem:[#allocation7 + $0x698] sm:$0xff]
          %v906 = vld [vmem:[#allocation7 + $0x6a0] sm:$0xff]
          %v907 = vld [vmem:[#allocation7 + $0x6a8] sm:$0xff]
          %v908 = vld [vmem:[#allocation7 + $0x6b0] sm:$0xff]
          %v909 = vld [vmem:[#allocation7 + $0x6b8] sm:$0xff]
          %v910 = vld [vmem:[#allocation7 + $0x6c0] sm:$0xff]
          %v911 = vld [vmem:[#allocation7 + $0x6c8] sm:$0xff]
          %v912 = vld [vmem:[#allocation7 + $0x6d0] sm:$0xff]
          %v913 = vld [vmem:[#allocation7 + $0x6d8] sm:$0xff]
          %v914 = vld [vmem:[#allocation7 + $0x6e0] sm:$0xff]
          %v915 = vld [vmem:[#allocation7 + $0x6e8] sm:$0xff]
          %v916 = vld [vmem:[#allocation7 + $0x6f0] sm:$0xff]
          %v917 = vld [vmem:[#allocation7 + $0x6f8] sm:$0xff]
          %v918 = vld [vmem:[#allocation7 + $0x700] sm:$0xff]
          %v919 = vld [vmem:[#allocation7 + $0x708] sm:$0xff]
          %v920 = vld [vmem:[#allocation7 + $0x710] sm:$0xff]
          %v921 = vld [vmem:[#allocation7 + $0x718] sm:$0xff]
          %v922 = vld [vmem:[#allocation7 + $0x720] sm:$0xff]
          %v923 = vld [vmem:[#allocation7 + $0x728] sm:$0xff]
          %v924 = vld [vmem:[#allocation7 + $0x730] sm:$0xff]
          %v925 = vld [vmem:[#allocation7 + $0x738] sm:$0xff]
          %v926 = vld [vmem:[#allocation7 + $0x740] sm:$0xff]
          %v927 = vld [vmem:[#allocation7 + $0x748] sm:$0xff]
          %v928 = vld [vmem:[#allocation7 + $0x750] sm:$0xff]
          %v929 = vld [vmem:[#allocation7 + $0x758] sm:$0xff]
          %v930 = vld [vmem:[#allocation7 + $0x760] sm:$0xff]
          %v931 = vld [vmem:[#allocation7 + $0x768] sm:$0xff]
          %v932 = vld [vmem:[#allocation7 + $0x770] sm:$0xff]
          %v933 = vld [vmem:[#allocation7 + $0x778] sm:$0xff]
          %v934 = vld [vmem:[#allocation7 + $0x780] sm:$0xff]
          %v935 = vld [vmem:[#allocation7 + $0x788] sm:$0xff]
          %v936 = vld [vmem:[#allocation7 + $0x790] sm:$0xff]
          %v937 = vld [vmem:[#allocation7 + $0x798] sm:$0xff]
          %v938 = vld [vmem:[#allocation7 + $0x7a0] sm:$0xff]
          %v939 = vld [vmem:[#allocation7 + $0x7a8] sm:$0xff]
          %v940 = vld [vmem:[#allocation7 + $0x7b0] sm:$0xff]
          %v941 = vld [vmem:[#allocation7 + $0x7b8] sm:$0xff]
          %v942 = vld [vmem:[#allocation7 + $0x7c0] sm:$0xff]
          %v943 = vld [vmem:[#allocation7 + $0x7c8] sm:$0xff]
          %v944 = vld [vmem:[#allocation7 + $0x7d0] sm:$0xff]
          %v945 = vld [vmem:[#allocation7 + $0x7d8] sm:$0xff]
          %v946 = vld [vmem:[#allocation7 + $0x7e0] sm:$0xff]
          %v947 = vld [vmem:[#allocation7 + $0x7e8] sm:$0xff]
          %v948 = vld [vmem:[#allocation7 + $0x7f0] sm:$0xff]
          %v949 = vld [vmem:[#allocation7 + $0x7f8] sm:$0xff]
          %v950 = vld [vmem:[%s5] sm:$0xf]
          %v952 = vperm.slane %v950, 0
          %v953 = vperm.slane %v950, 1
          %v954 = vperm.slane %v950, 2
          %v955 = vperm.slane %v950, 3
          %960 = vmatpush.msra.mxu0 %v754
          %961 = vmatpush.msra.mxu0 %v750
          %962 = vmatpush.msra.mxu0 %v746
          %963 = vmatpush.msra.mxu0 %v742
          %964 = vmatpush.msra.mxu0 %v738
          %965 = vmatpush.msra.mxu0 %v734
          %966 = vmatpush.msra.mxu0 %v730
          %967 = vmatpush.msra.mxu0 %v726
          %968 = vmatpush.msra.mxu0 %v722
          %969 = vmatpush.msra.mxu0 %v718
          %970 = vmatpush.msra.mxu0 %v714
          %971 = vmatpush.msra.mxu0 %v710
          %972 = vmatpush.msra.mxu0 %v706
          %973 = vmatpush.msra.mxu0 %v702
          %974 = vmatpush.msra.mxu0 %v698
          %975 = vmatpush.msra.mxu0 %v694
          %976 = vmatmul.f32.gmra.mxu0 %v690
          %v977 = vpop.f32.mrf.mxu0
          %v978 = vadd.f32 %v952, %v977
          %979 = vdwg.mxu0
          %980 = vmatpush.msra.mxu0 %v818
          %981 = vmatpush.msra.mxu0 %v814
          %982 = vmatpush.msra.mxu0 %v810
          %983 = vmatpush.msra.mxu0 %v806
          %984 = vmatpush.msra.mxu0 %v802
          %985 = vmatpush.msra.mxu0 %v798
          %986 = vmatpush.msra.mxu0 %v794
          %987 = vmatpush.msra.mxu0 %v790
          %988 = vmatpush.msra.mxu0 %v786
          %989 = vmatpush.msra.mxu0 %v782
          %990 = vmatpush.msra.mxu0 %v778
          %991 = vmatpush.msra.mxu0 %v774
          %992 = vmatpush.msra.mxu0 %v770
          %993 = vmatpush.msra.mxu0 %v766
          %994 = vmatpush.msra.mxu0 %v762
          %995 = vmatpush.msra.mxu0 %v758
          %996 = vmatmul.f32.gmra.mxu0 %v691
          %v997 = vpop.f32.mrf.mxu0
          %v998 = vadd.f32 %v978, %v997
          %999 = vdwg.mxu0
          %1000 = vmatpush.msra.mxu0 %v882
          %1001 = vmatpush.msra.mxu0 %v878
          %1002 = vmatpush.msra.mxu0 %v874
          %1003 = vmatpush.msra.mxu0 %v870
          %1004 = vmatpush.msra.mxu0 %v866
          %1005 = vmatpush.msra.mxu0 %v862
          %1006 = vmatpush.msra.mxu0 %v858
          %1007 = vmatpush.msra.mxu0 %v854
          %1008 = vmatpush.msra.mxu0 %v850
          %1009 = vmatpush.msra.mxu0 %v846
          %1010 = vmatpush.msra.mxu0 %v842
          %1011 = vmatpush.msra.mxu0 %v838
          %1012 = vmatpush.msra.mxu0 %v834
          %1013 = vmatpush.msra.mxu0 %v830
          %1014 = vmatpush.msra.mxu0 %v826
          %1015 = vmatpush.msra.mxu0 %v822
          %1016 = vmatmul.f32.gmra.mxu0 %v692
          %v1017 = vpop.f32.mrf.mxu0
          %v1018 = vadd.f32 %v998, %v1017
          %1019 = vdwg.mxu0
          %1020 = vmatpush.msra.mxu0 %v946
          %1021 = vmatpush.msra.mxu0 %v942
          %1022 = vmatpush.msra.mxu0 %v938
          %1023 = vmatpush.msra.mxu0 %v934
          %1024 = vmatpush.msra.mxu0 %v930
          %1025 = vmatpush.msra.mxu0 %v926
          %1026 = vmatpush.msra.mxu0 %v922
          %1027 = vmatpush.msra.mxu0 %v918
          %1028 = vmatpush.msra.mxu0 %v914
          %1029 = vmatpush.msra.mxu0 %v910
          %1030 = vmatpush.msra.mxu0 %v906
          %1031 = vmatpush.msra.mxu0 %v902
          %1032 = vmatpush.msra.mxu0 %v898
          %1033 = vmatpush.msra.mxu0 %v894
          %1034 = vmatpush.msra.mxu0 %v890
          %1035 = vmatpush.msra.mxu0 %v886
          %1036 = vmatmul.f32.gmra.mxu0 %v693
          %v1037 = vpop.f32.mrf.mxu0
          %v1038 = vadd.f32 %v1018, %v1037
          %1039 = vdwg.mxu0
          %1040 = vmatpush.msra.mxu0 %v755
          %1041 = vmatpush.msra.mxu0 %v751
          %1042 = vmatpush.msra.mxu0 %v747
          %1043 = vmatpush.msra.mxu0 %v743
          %1044 = vmatpush.msra.mxu0 %v739
          %1045 = vmatpush.msra.mxu0 %v735
          %1046 = vmatpush.msra.mxu0 %v731
          %1047 = vmatpush.msra.mxu0 %v727
          %1048 = vmatpush.msra.mxu0 %v723
          %1049 = vmatpush.msra.mxu0 %v719
          %1050 = vmatpush.msra.mxu0 %v715
          %1051 = vmatpush.msra.mxu0 %v711
          %1052 = vmatpush.msra.mxu0 %v707
          %1053 = vmatpush.msra.mxu0 %v703
          %1054 = vmatpush.msra.mxu0 %v699
          %1055 = vmatpush.msra.mxu0 %v695
          %1056 = vmatmul.f32.gmra.mxu0 %v690
          %v1057 = vpop.f32.mrf.mxu0
          %v1058 = vadd.f32 %v953, %v1057
          %1059 = vdwg.mxu0
          %1060 = vmatpush.msra.mxu0 %v819
          %1061 = vmatpush.msra.mxu0 %v815
          %1062 = vmatpush.msra.mxu0 %v811
          %1063 = vmatpush.msra.mxu0 %v807
          %1064 = vmatpush.msra.mxu0 %v803
          %1065 = vmatpush.msra.mxu0 %v799
          %1066 = vmatpush.msra.mxu0 %v795
          %1067 = vmatpush.msra.mxu0 %v791
          %1068 = vmatpush.msra.mxu0 %v787
          %1069 = vmatpush.msra.mxu0 %v783
          %1070 = vmatpush.msra.mxu0 %v779
          %1071 = vmatpush.msra.mxu0 %v775
          %1072 = vmatpush.msra.mxu0 %v771
          %1073 = vmatpush.msra.mxu0 %v767
          %1074 = vmatpush.msra.mxu0 %v763
          %1075 = vmatpush.msra.mxu0 %v759
          %1076 = vmatmul.f32.gmra.mxu0 %v691
          %v1077 = vpop.f32.mrf.mxu0
          %v1078 = vadd.f32 %v1058, %v1077
          %1079 = vdwg.mxu0
          %1080 = vmatpush.msra.mxu0 %v883
          %1081 = vmatpush.msra.mxu0 %v879
          %1082 = vmatpush.msra.mxu0 %v875
          %1083 = vmatpush.msra.mxu0 %v871
          %1084 = vmatpush.msra.mxu0 %v867
          %1085 = vmatpush.msra.mxu0 %v863
          %1086 = vmatpush.msra.mxu0 %v859
          %1087 = vmatpush.msra.mxu0 %v855
          %1088 = vmatpush.msra.mxu0 %v851
          %1089 = vmatpush.msra.mxu0 %v847
          %1090 = vmatpush.msra.mxu0 %v843
          %1091 = vmatpush.msra.mxu0 %v839
          %1092 = vmatpush.msra.mxu0 %v835
          %1093 = vmatpush.msra.mxu0 %v831
          %1094 = vmatpush.msra.mxu0 %v827
          %1095 = vmatpush.msra.mxu0 %v823
          %1096 = vmatmul.f32.gmra.mxu0 %v692
          %v1097 = vpop.f32.mrf.mxu0
          %v1098 = vadd.f32 %v1078, %v1097
          %1099 = vdwg.mxu0
          %1100 = vmatpush.msra.mxu0 %v947
          %1101 = vmatpush.msra.mxu0 %v943
          %1102 = vmatpush.msra.mxu0 %v939
          %1103 = vmatpush.msra.mxu0 %v935
          %1104 = vmatpush.msra.mxu0 %v931
          %1105 = vmatpush.msra.mxu0 %v927
          %1106 = vmatpush.msra.mxu0 %v923
          %1107 = vmatpush.msra.mxu0 %v919
          %1108 = vmatpush.msra.mxu0 %v915
          %1109 = vmatpush.msra.mxu0 %v911
          %1110 = vmatpush.msra.mxu0 %v907
          %1111 = vmatpush.msra.mxu0 %v903
          %1112 = vmatpush.msra.mxu0 %v899
          %1113 = vmatpush.msra.mxu0 %v895
          %1114 = vmatpush.msra.mxu0 %v891
          %1115 = vmatpush.msra.mxu0 %v887
          %1116 = vmatmul.f32.gmra.mxu0 %v693
          %v1117 = vpop.f32.mrf.mxu0
          %v1118 = vadd.f32 %v1098, %v1117
          %1119 = vdwg.mxu0
          %1120 = vmatpush.msra.mxu0 %v756
          %1121 = vmatpush.msra.mxu0 %v752
          %1122 = vmatpush.msra.mxu0 %v748
          %1123 = vmatpush.msra.mxu0 %v744
          %1124 = vmatpush.msra.mxu0 %v740
          %1125 = vmatpush.msra.mxu0 %v736
          %1126 = vmatpush.msra.mxu0 %v732
          %1127 = vmatpush.msra.mxu0 %v728
          %1128 = vmatpush.msra.mxu0 %v724
          %1129 = vmatpush.msra.mxu0 %v720
          %1130 = vmatpush.msra.mxu0 %v716
          %1131 = vmatpush.msra.mxu0 %v712
          %1132 = vmatpush.msra.mxu0 %v708
          %1133 = vmatpush.msra.mxu0 %v704
          %1134 = vmatpush.msra.mxu0 %v700
          %1135 = vmatpush.msra.mxu0 %v696
          %1136 = vmatmul.f32.gmra.mxu0 %v690
          %v1137 = vpop.f32.mrf.mxu0
          %v1138 = vadd.f32 %v954, %v1137
          %1139 = vdwg.mxu0
          %1140 = vmatpush.msra.mxu0 %v820
          %1141 = vmatpush.msra.mxu0 %v816
          %1142 = vmatpush.msra.mxu0 %v812
          %1143 = vmatpush.msra.mxu0 %v808
          %1144 = vmatpush.msra.mxu0 %v804
          %1145 = vmatpush.msra.mxu0 %v800
          %1146 = vmatpush.msra.mxu0 %v796
          %1147 = vmatpush.msra.mxu0 %v792
          %1148 = vmatpush.msra.mxu0 %v788
          %1149 = vmatpush.msra.mxu0 %v784
          %1150 = vmatpush.msra.mxu0 %v780
          %1151 = vmatpush.msra.mxu0 %v776
          %1152 = vmatpush.msra.mxu0 %v772
          %1153 = vmatpush.msra.mxu0 %v768
          %1154 = vmatpush.msra.mxu0 %v764
          %1155 = vmatpush.msra.mxu0 %v760
          %1156 = vmatmul.f32.gmra.mxu0 %v691
          %v1157 = vpop.f32.mrf.mxu0
          %v1158 = vadd.f32 %v1138, %v1157
          %1159 = vdwg.mxu0
          %1160 = vmatpush.msra.mxu0 %v884
          %1161 = vmatpush.msra.mxu0 %v880
          %1162 = vmatpush.msra.mxu0 %v876
          %1163 = vmatpush.msra.mxu0 %v872
          %1164 = vmatpush.msra.mxu0 %v868
          %1165 = vmatpush.msra.mxu0 %v864
          %1166 = vmatpush.msra.mxu0 %v860
          %1167 = vmatpush.msra.mxu0 %v856
          %1168 = vmatpush.msra.mxu0 %v852
          %1169 = vmatpush.msra.mxu0 %v848
          %1170 = vmatpush.msra.mxu0 %v844
          %1171 = vmatpush.msra.mxu0 %v840
          %1172 = vmatpush.msra.mxu0 %v836
          %1173 = vmatpush.msra.mxu0 %v832
          %1174 = vmatpush.msra.mxu0 %v828
          %1175 = vmatpush.msra.mxu0 %v824
          %1176 = vmatmul.f32.gmra.mxu0 %v692
          %v1177 = vpop.f32.mrf.mxu0
          %v1178 = vadd.f32 %v1158, %v1177
          %1179 = vdwg.mxu0
          %1180 = vmatpush.msra.mxu0 %v948
          %1181 = vmatpush.msra.mxu0 %v944
          %1182 = vmatpush.msra.mxu0 %v940
          %1183 = vmatpush.msra.mxu0 %v936
          %1184 = vmatpush.msra.mxu0 %v932
          %1185 = vmatpush.msra.mxu0 %v928
          %1186 = vmatpush.msra.mxu0 %v924
          %1187 = vmatpush.msra.mxu0 %v920
          %1188 = vmatpush.msra.mxu0 %v916
          %1189 = vmatpush.msra.mxu0 %v912
          %1190 = vmatpush.msra.mxu0 %v908
          %1191 = vmatpush.msra.mxu0 %v904
          %1192 = vmatpush.msra.mxu0 %v900
          %1193 = vmatpush.msra.mxu0 %v896
          %1194 = vmatpush.msra.mxu0 %v892
          %1195 = vmatpush.msra.mxu0 %v888
          %1196 = vmatmul.f32.gmra.mxu0 %v693
          %v1197 = vpop.f32.mrf.mxu0
          %v1198 = vadd.f32 %v1178, %v1197
          %1199 = vdwg.mxu0
          %1200 = vmatpush.msra.mxu0 %v757
          %1201 = vmatpush.msra.mxu0 %v753
          %1202 = vmatpush.msra.mxu0 %v749
          %1203 = vmatpush.msra.mxu0 %v745
          %1204 = vmatpush.msra.mxu0 %v741
          %1205 = vmatpush.msra.mxu0 %v737
          %1206 = vmatpush.msra.mxu0 %v733
          %1207 = vmatpush.msra.mxu0 %v729
          %1208 = vmatpush.msra.mxu0 %v725
          %1209 = vmatpush.msra.mxu0 %v721
          %1210 = vmatpush.msra.mxu0 %v717
          %1211 = vmatpush.msra.mxu0 %v713
          %1212 = vmatpush.msra.mxu0 %v709
          %1213 = vmatpush.msra.mxu0 %v705
          %1214 = vmatpush.msra.mxu0 %v701
          %1215 = vmatpush.msra.mxu0 %v697
          %1216 = vmatmul.f32.gmra.mxu0 %v690
          %v1217 = vpop.f32.mrf.mxu0
          %v1218 = vadd.f32 %v955, %v1217
          %1219 = vdwg.mxu0
          %1220 = vmatpush.msra.mxu0 %v821
          %1221 = vmatpush.msra.mxu0 %v817
          %1222 = vmatpush.msra.mxu0 %v813
          %1223 = vmatpush.msra.mxu0 %v809
          %1224 = vmatpush.msra.mxu0 %v805
          %1225 = vmatpush.msra.mxu0 %v801
          %1226 = vmatpush.msra.mxu0 %v797
          %1227 = vmatpush.msra.mxu0 %v793
          %1228 = vmatpush.msra.mxu0 %v789
          %1229 = vmatpush.msra.mxu0 %v785
          %1230 = vmatpush.msra.mxu0 %v781
          %1231 = vmatpush.msra.mxu0 %v777
          %1232 = vmatpush.msra.mxu0 %v773
          %1233 = vmatpush.msra.mxu0 %v769
          %1234 = vmatpush.msra.mxu0 %v765
          %1235 = vmatpush.msra.mxu0 %v761
          %1236 = vmatmul.f32.gmra.mxu0 %v691
          %v1237 = vpop.f32.mrf.mxu0
          %v1238 = vadd.f32 %v1218, %v1237
          %1239 = vdwg.mxu0
          %1240 = vmatpush.msra.mxu0 %v885
          %1241 = vmatpush.msra.mxu0 %v881
          %1242 = vmatpush.msra.mxu0 %v877
          %1243 = vmatpush.msra.mxu0 %v873
          %1244 = vmatpush.msra.mxu0 %v869
          %1245 = vmatpush.msra.mxu0 %v865
          %1246 = vmatpush.msra.mxu0 %v861
          %1247 = vmatpush.msra.mxu0 %v857
          %1248 = vmatpush.msra.mxu0 %v853
          %1249 = vmatpush.msra.mxu0 %v849
          %1250 = vmatpush.msra.mxu0 %v845
          %1251 = vmatpush.msra.mxu0 %v841
          %1252 = vmatpush.msra.mxu0 %v837
          %1253 = vmatpush.msra.mxu0 %v833
          %1254 = vmatpush.msra.mxu0 %v829
          %1255 = vmatpush.msra.mxu0 %v825
          %1256 = vmatmul.f32.gmra.mxu0 %v692
          %v1257 = vpop.f32.mrf.mxu0
          %v1258 = vadd.f32 %v1238, %v1257
          %1259 = vdwg.mxu0
          %1260 = vmatpush.msra.mxu0 %v949
          %1261 = vmatpush.msra.mxu0 %v945
          %1262 = vmatpush.msra.mxu0 %v941
          %1263 = vmatpush.msra.mxu0 %v937
          %1264 = vmatpush.msra.mxu0 %v933
          %1265 = vmatpush.msra.mxu0 %v929
          %1266 = vmatpush.msra.mxu0 %v925
          %1267 = vmatpush.msra.mxu0 %v921
          %1268 = vmatpush.msra.mxu0 %v917
          %1269 = vmatpush.msra.mxu0 %v913
          %1270 = vmatpush.msra.mxu0 %v909
          %1271 = vmatpush.msra.mxu0 %v905
          %1272 = vmatpush.msra.mxu0 %v901
          %1273 = vmatpush.msra.mxu0 %v897
          %1274 = vmatpush.msra.mxu0 %v893
          %1275 = vmatpush.msra.mxu0 %v889
          %1276 = vmatmul.f32.gmra.mxu0 %v693
          %v1277 = vpop.f32.mrf.mxu0
          %v1278 = vadd.f32 %v1258, %v1277
          %1279 = vdwg.mxu0
          %v1280 = vld [vmem:[#allocation5] sm:$0x3]
          %v1281 = vld [vmem:[#allocation9] sm:$0xff]
          %v1282 = vld [vmem:[#allocation9 + $0x8] sm:$0xff]
          %v1283 = vld [vmem:[#allocation9 + $0x10] sm:$0xff]
          %v1284 = vld [vmem:[#allocation9 + $0x18] sm:$0xff]
          %v1285 = vld [vmem:[#allocation9 + $0x20] sm:$0xff]
          %v1286 = vld [vmem:[#allocation9 + $0x28] sm:$0xff]
          %v1287 = vld [vmem:[#allocation9 + $0x30] sm:$0xff]
          %v1288 = vld [vmem:[#allocation9 + $0x38] sm:$0xff]
          %v1289 = vld [vmem:[#allocation9 + $0x40] sm:$0xff]
          %v1290 = vld [vmem:[#allocation9 + $0x48] sm:$0xff]
          %v1291 = vld [vmem:[#allocation9 + $0x50] sm:$0xff]
          %v1292 = vld [vmem:[#allocation9 + $0x58] sm:$0xff]
          %v1293 = vld [vmem:[#allocation9 + $0x60] sm:$0xff]
          %v1294 = vld [vmem:[#allocation9 + $0x68] sm:$0xff]
          %v1295 = vld [vmem:[#allocation9 + $0x70] sm:$0xff]
          %v1296 = vld [vmem:[#allocation9 + $0x78] sm:$0xff]
          %v1297 = vld [vmem:[#allocation9 + $0x80] sm:$0xff]
          %v1298 = vld [vmem:[#allocation9 + $0x88] sm:$0xff]
          %v1299 = vld [vmem:[#allocation9 + $0x90] sm:$0xff]
          %v1300 = vld [vmem:[#allocation9 + $0x98] sm:$0xff]
          %v1301 = vld [vmem:[#allocation9 + $0xa0] sm:$0xff]
          %v1302 = vld [vmem:[#allocation9 + $0xa8] sm:$0xff]
          %v1303 = vld [vmem:[#allocation9 + $0xb0] sm:$0xff]
          %v1304 = vld [vmem:[#allocation9 + $0xb8] sm:$0xff]
          %v1305 = vld [vmem:[#allocation9 + $0xc0] sm:$0xff]
          %v1306 = vld [vmem:[#allocation9 + $0xc8] sm:$0xff]
          %v1307 = vld [vmem:[#allocation9 + $0xd0] sm:$0xff]
          %v1308 = vld [vmem:[#allocation9 + $0xd8] sm:$0xff]
          %v1309 = vld [vmem:[#allocation9 + $0xe0] sm:$0xff]
          %v1310 = vld [vmem:[#allocation9 + $0xe8] sm:$0xff]
          %v1311 = vld [vmem:[#allocation9 + $0xf0] sm:$0xff]
          %v1312 = vld [vmem:[#allocation9 + $0xf8] sm:$0xff]
          %v1313 = vld [vmem:[#allocation9 + $0x100] sm:$0xff]
          %v1314 = vld [vmem:[#allocation9 + $0x108] sm:$0xff]
          %v1315 = vld [vmem:[#allocation9 + $0x110] sm:$0xff]
          %v1316 = vld [vmem:[#allocation9 + $0x118] sm:$0xff]
          %v1317 = vld [vmem:[#allocation9 + $0x120] sm:$0xff]
          %v1318 = vld [vmem:[#allocation9 + $0x128] sm:$0xff]
          %v1319 = vld [vmem:[#allocation9 + $0x130] sm:$0xff]
          %v1320 = vld [vmem:[#allocation9 + $0x138] sm:$0xff]
          %v1321 = vld [vmem:[#allocation9 + $0x140] sm:$0xff]
          %v1322 = vld [vmem:[#allocation9 + $0x148] sm:$0xff]
          %v1323 = vld [vmem:[#allocation9 + $0x150] sm:$0xff]
          %v1324 = vld [vmem:[#allocation9 + $0x158] sm:$0xff]
          %v1325 = vld [vmem:[#allocation9 + $0x160] sm:$0xff]
          %v1326 = vld [vmem:[#allocation9 + $0x168] sm:$0xff]
          %v1327 = vld [vmem:[#allocation9 + $0x170] sm:$0xff]
          %v1328 = vld [vmem:[#allocation9 + $0x178] sm:$0xff]
          %v1329 = vld [vmem:[#allocation9 + $0x180] sm:$0xff]
          %v1330 = vld [vmem:[#allocation9 + $0x188] sm:$0xff]
          %v1331 = vld [vmem:[#allocation9 + $0x190] sm:$0xff]
          %v1332 = vld [vmem:[#allocation9 + $0x198] sm:$0xff]
          %v1333 = vld [vmem:[#allocation9 + $0x1a0] sm:$0xff]
          %v1334 = vld [vmem:[#allocation9 + $0x1a8] sm:$0xff]
          %v1335 = vld [vmem:[#allocation9 + $0x1b0] sm:$0xff]
          %v1336 = vld [vmem:[#allocation9 + $0x1b8] sm:$0xff]
          %v1337 = vld [vmem:[#allocation9 + $0x1c0] sm:$0xff]
          %v1338 = vld [vmem:[#allocation9 + $0x1c8] sm:$0xff]
          %v1339 = vld [vmem:[#allocation9 + $0x1d0] sm:$0xff]
          %v1340 = vld [vmem:[#allocation9 + $0x1d8] sm:$0xff]
          %v1341 = vld [vmem:[#allocation9 + $0x1e0] sm:$0xff]
          %v1342 = vld [vmem:[#allocation9 + $0x1e8] sm:$0xff]
          %v1343 = vld [vmem:[#allocation9 + $0x1f0] sm:$0xff]
          %v1344 = vld [vmem:[#allocation9 + $0x1f8] sm:$0xff]
          %v1345 = vld [vmem:[%s7] sm:$0xf]
          %v1347 = vperm.slane %v1345, 0
          %v1348 = vperm.slane %v1345, 1
          %v1349 = vperm.slane %v1345, 2
          %v1350 = vperm.slane %v1345, 3
          %1355 = vmatpush.msra.mxu0 %v1341
          %1356 = vmatpush.msra.mxu0 %v1337
          %1357 = vmatpush.msra.mxu0 %v1333
          %1358 = vmatpush.msra.mxu0 %v1329
          %1359 = vmatpush.msra.mxu0 %v1325
          %1360 = vmatpush.msra.mxu0 %v1321
          %1361 = vmatpush.msra.mxu0 %v1317
          %1362 = vmatpush.msra.mxu0 %v1313
          %1363 = vmatpush.msra.mxu0 %v1309
          %1364 = vmatpush.msra.mxu0 %v1305
          %1365 = vmatpush.msra.mxu0 %v1301
          %1366 = vmatpush.msra.mxu0 %v1297
          %1367 = vmatpush.msra.mxu0 %v1293
          %1368 = vmatpush.msra.mxu0 %v1289
          %1369 = vmatpush.msra.mxu0 %v1285
          %1370 = vmatpush.msra.mxu0 %v1281
          %1371 = vmatmul.f32.gmra.mxu0 %v1280
          %v1372 = vpop.f32.mrf.mxu0
          %v1373 = vadd.f32 %v1347, %v1372
          %1374 = vdwg.mxu0
          %1375 = vmatpush.msra.mxu0 %v1342
          %1376 = vmatpush.msra.mxu0 %v1338
          %1377 = vmatpush.msra.mxu0 %v1334
          %1378 = vmatpush.msra.mxu0 %v1330
          %1379 = vmatpush.msra.mxu0 %v1326
          %1380 = vmatpush.msra.mxu0 %v1322
          %1381 = vmatpush.msra.mxu0 %v1318
          %1382 = vmatpush.msra.mxu0 %v1314
          %1383 = vmatpush.msra.mxu0 %v1310
          %1384 = vmatpush.msra.mxu0 %v1306
          %1385 = vmatpush.msra.mxu0 %v1302
          %1386 = vmatpush.msra.mxu0 %v1298
          %1387 = vmatpush.msra.mxu0 %v1294
          %1388 = vmatpush.msra.mxu0 %v1290
          %1389 = vmatpush.msra.mxu0 %v1286
          %1390 = vmatpush.msra.mxu0 %v1282
          %1391 = vmatmul.f32.gmra.mxu0 %v1280
          %v1392 = vpop.f32.mrf.mxu0
          %v1393 = vadd.f32 %v1348, %v1392
          %1394 = vdwg.mxu0
          %1395 = vmatpush.msra.mxu0 %v1343
          %1396 = vmatpush.msra.mxu0 %v1339
          %1397 = vmatpush.msra.mxu0 %v1335
          %1398 = vmatpush.msra.mxu0 %v1331
          %1399 = vmatpush.msra.mxu0 %v1327
          %1400 = vmatpush.msra.mxu0 %v1323
          %1401 = vmatpush.msra.mxu0 %v1319
          %1402 = vmatpush.msra.mxu0 %v1315
          %1403 = vmatpush.msra.mxu0 %v1311
          %1404 = vmatpush.msra.mxu0 %v1307
          %1405 = vmatpush.msra.mxu0 %v1303
          %1406 = vmatpush.msra.mxu0 %v1299
          %1407 = vmatpush.msra.mxu0 %v1295
          %1408 = vmatpush.msra.mxu0 %v1291
          %1409 = vmatpush.msra.mxu0 %v1287
          %1410 = vmatpush.msra.mxu0 %v1283
          %1411 = vmatmul.f32.gmra.mxu0 %v1280
          %v1412 = vpop.f32.mrf.mxu0
          %v1413 = vadd.f32 %v1349, %v1412
          %1414 = vdwg.mxu0
          %1415 = vmatpush.msra.mxu0 %v1344
          %1416 = vmatpush.msra.mxu0 %v1340
          %1417 = vmatpush.msra.mxu0 %v1336
          %1418 = vmatpush.msra.mxu0 %v1332
          %1419 = vmatpush.msra.mxu0 %v1328
          %1420 = vmatpush.msra.mxu0 %v1324
          %1421 = vmatpush.msra.mxu0 %v1320
          %1422 = vmatpush.msra.mxu0 %v1316
          %1423 = vmatpush.msra.mxu0 %v1312
          %1424 = vmatpush.msra.mxu0 %v1308
          %1425 = vmatpush.msra.mxu0 %v1304
          %1426 = vmatpush.msra.mxu0 %v1300
          %1427 = vmatpush.msra.mxu0 %v1296
          %1428 = vmatpush.msra.mxu0 %v1292
          %1429 = vmatpush.msra.mxu0 %v1288
          %1430 = vmatpush.msra.mxu0 %v1284
          %1431 = vmatmul.f32.gmra.mxu0 %v1280
          %v1432 = vpop.f32.mrf.mxu0
          %v1433 = vadd.f32 %v1350, %v1432
          %1434 = vdwg.mxu0
          %v1435 = vmax.f32 %v1373, 0.0
          %v1436 = vmax.f32 %v1393, 0.0
          %v1437 = vmax.f32 %v1413, 0.0
          %v1438 = vmax.f32 %v1433, 0.0
          %v1439 = vld [vmem:[#allocation10] sm:$0xff]
          %v1440 = vld [vmem:[#allocation10 + $0x8] sm:$0xff]
          %v1441 = vld [vmem:[#allocation10 + $0x10] sm:$0xff]
          %v1442 = vld [vmem:[#allocation10 + $0x18] sm:$0xff]
          %v1443 = vld [vmem:[#allocation10 + $0x20] sm:$0xff]
          %v1444 = vld [vmem:[#allocation10 + $0x28] sm:$0xff]
          %v1445 = vld [vmem:[#allocation10 + $0x30] sm:$0xff]
          %v1446 = vld [vmem:[#allocation10 + $0x38] sm:$0xff]
          %v1447 = vld [vmem:[#allocation10 + $0x40] sm:$0xff]
          %v1448 = vld [vmem:[#allocation10 + $0x48] sm:$0xff]
          %v1449 = vld [vmem:[#allocation10 + $0x50] sm:$0xff]
          %v1450 = vld [vmem:[#allocation10 + $0x58] sm:$0xff]
          %v1451 = vld [vmem:[#allocation10 + $0x60] sm:$0xff]
          %v1452 = vld [vmem:[#allocation10 + $0x68] sm:$0xff]
          %v1453 = vld [vmem:[#allocation10 + $0x70] sm:$0xff]
          %v1454 = vld [vmem:[#allocation10 + $0x78] sm:$0xff]
          %v1455 = vld [vmem:[#allocation10 + $0x80] sm:$0xff]
          %v1456 = vld [vmem:[#allocation10 + $0x88] sm:$0xff]
          %v1457 = vld [vmem:[#allocation10 + $0x90] sm:$0xff]
          %v1458 = vld [vmem:[#allocation10 + $0x98] sm:$0xff]
          %v1459 = vld [vmem:[#allocation10 + $0xa0] sm:$0xff]
          %v1460 = vld [vmem:[#allocation10 + $0xa8] sm:$0xff]
          %v1461 = vld [vmem:[#allocation10 + $0xb0] sm:$0xff]
          %v1462 = vld [vmem:[#allocation10 + $0xb8] sm:$0xff]
          %v1463 = vld [vmem:[#allocation10 + $0xc0] sm:$0xff]
          %v1464 = vld [vmem:[#allocation10 + $0xc8] sm:$0xff]
          %v1465 = vld [vmem:[#allocation10 + $0xd0] sm:$0xff]
          %v1466 = vld [vmem:[#allocation10 + $0xd8] sm:$0xff]
          %v1467 = vld [vmem:[#allocation10 + $0xe0] sm:$0xff]
          %v1468 = vld [vmem:[#allocation10 + $0xe8] sm:$0xff]
          %v1469 = vld [vmem:[#allocation10 + $0xf0] sm:$0xff]
          %v1470 = vld [vmem:[#allocation10 + $0xf8] sm:$0xff]
          %v1471 = vld [vmem:[#allocation10 + $0x100] sm:$0xff]
          %v1472 = vld [vmem:[#allocation10 + $0x108] sm:$0xff]
          %v1473 = vld [vmem:[#allocation10 + $0x110] sm:$0xff]
          %v1474 = vld [vmem:[#allocation10 + $0x118] sm:$0xff]
          %v1475 = vld [vmem:[#allocation10 + $0x120] sm:$0xff]
          %v1476 = vld [vmem:[#allocation10 + $0x128] sm:$0xff]
          %v1477 = vld [vmem:[#allocation10 + $0x130] sm:$0xff]
          %v1478 = vld [vmem:[#allocation10 + $0x138] sm:$0xff]
          %v1479 = vld [vmem:[#allocation10 + $0x140] sm:$0xff]
          %v1480 = vld [vmem:[#allocation10 + $0x148] sm:$0xff]
          %v1481 = vld [vmem:[#allocation10 + $0x150] sm:$0xff]
          %v1482 = vld [vmem:[#allocation10 + $0x158] sm:$0xff]
          %v1483 = vld [vmem:[#allocation10 + $0x160] sm:$0xff]
          %v1484 = vld [vmem:[#allocation10 + $0x168] sm:$0xff]
          %v1485 = vld [vmem:[#allocation10 + $0x170] sm:$0xff]
          %v1486 = vld [vmem:[#allocation10 + $0x178] sm:$0xff]
          %v1487 = vld [vmem:[#allocation10 + $0x180] sm:$0xff]
          %v1488 = vld [vmem:[#allocation10 + $0x188] sm:$0xff]
          %v1489 = vld [vmem:[#allocation10 + $0x190] sm:$0xff]
          %v1490 = vld [vmem:[#allocation10 + $0x198] sm:$0xff]
          %v1491 = vld [vmem:[#allocation10 + $0x1a0] sm:$0xff]
          %v1492 = vld [vmem:[#allocation10 + $0x1a8] sm:$0xff]
          %v1493 = vld [vmem:[#allocation10 + $0x1b0] sm:$0xff]
          %v1494 = vld [vmem:[#allocation10 + $0x1b8] sm:$0xff]
          %v1495 = vld [vmem:[#allocation10 + $0x1c0] sm:$0xff]
          %v1496 = vld [vmem:[#allocation10 + $0x1c8] sm:$0xff]
          %v1497 = vld [vmem:[#allocation10 + $0x1d0] sm:$0xff]
          %v1498 = vld [vmem:[#allocation10 + $0x1d8] sm:$0xff]
          %v1499 = vld [vmem:[#allocation10 + $0x1e0] sm:$0xff]
          %v1500 = vld [vmem:[#allocation10 + $0x1e8] sm:$0xff]
          %v1501 = vld [vmem:[#allocation10 + $0x1f0] sm:$0xff]
          %v1502 = vld [vmem:[#allocation10 + $0x1f8] sm:$0xff]
          %v1503 = vld [vmem:[#allocation10 + $0x200] sm:$0xff]
          %v1504 = vld [vmem:[#allocation10 + $0x208] sm:$0xff]
          %v1505 = vld [vmem:[#allocation10 + $0x210] sm:$0xff]
          %v1506 = vld [vmem:[#allocation10 + $0x218] sm:$0xff]
          %v1507 = vld [vmem:[#allocation10 + $0x220] sm:$0xff]
          %v1508 = vld [vmem:[#allocation10 + $0x228] sm:$0xff]
          %v1509 = vld [vmem:[#allocation10 + $0x230] sm:$0xff]
          %v1510 = vld [vmem:[#allocation10 + $0x238] sm:$0xff]
          %v1511 = vld [vmem:[#allocation10 + $0x240] sm:$0xff]
          %v1512 = vld [vmem:[#allocation10 + $0x248] sm:$0xff]
          %v1513 = vld [vmem:[#allocation10 + $0x250] sm:$0xff]
          %v1514 = vld [vmem:[#allocation10 + $0x258] sm:$0xff]
          %v1515 = vld [vmem:[#allocation10 + $0x260] sm:$0xff]
          %v1516 = vld [vmem:[#allocation10 + $0x268] sm:$0xff]
          %v1517 = vld [vmem:[#allocation10 + $0x270] sm:$0xff]
          %v1518 = vld [vmem:[#allocation10 + $0x278] sm:$0xff]
          %v1519 = vld [vmem:[#allocation10 + $0x280] sm:$0xff]
          %v1520 = vld [vmem:[#allocation10 + $0x288] sm:$0xff]
          %v1521 = vld [vmem:[#allocation10 + $0x290] sm:$0xff]
          %v1522 = vld [vmem:[#allocation10 + $0x298] sm:$0xff]
          %v1523 = vld [vmem:[#allocation10 + $0x2a0] sm:$0xff]
          %v1524 = vld [vmem:[#allocation10 + $0x2a8] sm:$0xff]
          %v1525 = vld [vmem:[#allocation10 + $0x2b0] sm:$0xff]
          %v1526 = vld [vmem:[#allocation10 + $0x2b8] sm:$0xff]
          %v1527 = vld [vmem:[#allocation10 + $0x2c0] sm:$0xff]
          %v1528 = vld [vmem:[#allocation10 + $0x2c8] sm:$0xff]
          %v1529 = vld [vmem:[#allocation10 + $0x2d0] sm:$0xff]
          %v1530 = vld [vmem:[#allocation10 + $0x2d8] sm:$0xff]
          %v1531 = vld [vmem:[#allocation10 + $0x2e0] sm:$0xff]
          %v1532 = vld [vmem:[#allocation10 + $0x2e8] sm:$0xff]
          %v1533 = vld [vmem:[#allocation10 + $0x2f0] sm:$0xff]
          %v1534 = vld [vmem:[#allocation10 + $0x2f8] sm:$0xff]
          %v1535 = vld [vmem:[#allocation10 + $0x300] sm:$0xff]
          %v1536 = vld [vmem:[#allocation10 + $0x308] sm:$0xff]
          %v1537 = vld [vmem:[#allocation10 + $0x310] sm:$0xff]
          %v1538 = vld [vmem:[#allocation10 + $0x318] sm:$0xff]
          %v1539 = vld [vmem:[#allocation10 + $0x320] sm:$0xff]
          %v1540 = vld [vmem:[#allocation10 + $0x328] sm:$0xff]
          %v1541 = vld [vmem:[#allocation10 + $0x330] sm:$0xff]
          %v1542 = vld [vmem:[#allocation10 + $0x338] sm:$0xff]
          %v1543 = vld [vmem:[#allocation10 + $0x340] sm:$0xff]
          %v1544 = vld [vmem:[#allocation10 + $0x348] sm:$0xff]
          %v1545 = vld [vmem:[#allocation10 + $0x350] sm:$0xff]
          %v1546 = vld [vmem:[#allocation10 + $0x358] sm:$0xff]
          %v1547 = vld [vmem:[#allocation10 + $0x360] sm:$0xff]
          %v1548 = vld [vmem:[#allocation10 + $0x368] sm:$0xff]
          %v1549 = vld [vmem:[#allocation10 + $0x370] sm:$0xff]
          %v1550 = vld [vmem:[#allocation10 + $0x378] sm:$0xff]
          %v1551 = vld [vmem:[#allocation10 + $0x380] sm:$0xff]
          %v1552 = vld [vmem:[#allocation10 + $0x388] sm:$0xff]
          %v1553 = vld [vmem:[#allocation10 + $0x390] sm:$0xff]
          %v1554 = vld [vmem:[#allocation10 + $0x398] sm:$0xff]
          %v1555 = vld [vmem:[#allocation10 + $0x3a0] sm:$0xff]
          %v1556 = vld [vmem:[#allocation10 + $0x3a8] sm:$0xff]
          %v1557 = vld [vmem:[#allocation10 + $0x3b0] sm:$0xff]
          %v1558 = vld [vmem:[#allocation10 + $0x3b8] sm:$0xff]
          %v1559 = vld [vmem:[#allocation10 + $0x3c0] sm:$0xff]
          %v1560 = vld [vmem:[#allocation10 + $0x3c8] sm:$0xff]
          %v1561 = vld [vmem:[#allocation10 + $0x3d0] sm:$0xff]
          %v1562 = vld [vmem:[#allocation10 + $0x3d8] sm:$0xff]
          %v1563 = vld [vmem:[#allocation10 + $0x3e0] sm:$0xff]
          %v1564 = vld [vmem:[#allocation10 + $0x3e8] sm:$0xff]
          %v1565 = vld [vmem:[#allocation10 + $0x3f0] sm:$0xff]
          %v1566 = vld [vmem:[#allocation10 + $0x3f8] sm:$0xff]
          %v1567 = vld [vmem:[%s9] sm:$0x3]
          %v1569 = vperm.slane %v1567, 0
          %v1570 = vperm.slane %v1567, 1
          %1573 = vmatpush.msra.mxu0 %v1469
          %1574 = vmatpush.msra.mxu0 %v1467
          %1575 = vmatpush.msra.mxu0 %v1465
          %1576 = vmatpush.msra.mxu0 %v1463
          %1577 = vmatpush.msra.mxu0 %v1461
          %1578 = vmatpush.msra.mxu0 %v1459
          %1579 = vmatpush.msra.mxu0 %v1457
          %1580 = vmatpush.msra.mxu0 %v1455
          %1581 = vmatpush.msra.mxu0 %v1453
          %1582 = vmatpush.msra.mxu0 %v1451
          %1583 = vmatpush.msra.mxu0 %v1449
          %1584 = vmatpush.msra.mxu0 %v1447
          %1585 = vmatpush.msra.mxu0 %v1445
          %1586 = vmatpush.msra.mxu0 %v1443
          %1587 = vmatpush.msra.mxu0 %v1441
          %1588 = vmatpush.msra.mxu0 %v1439
          %1589 = vmatmul.f32.gmra.mxu0 %v1435
          %v1590 = vpop.f32.mrf.mxu0
          %v1591 = vadd.f32 %v1569, %v1590
          %1592 = vdwg.mxu0
          %1593 = vmatpush.msra.mxu0 %v1501
          %1594 = vmatpush.msra.mxu0 %v1499
          %1595 = vmatpush.msra.mxu0 %v1497
          %1596 = vmatpush.msra.mxu0 %v1495
          %1597 = vmatpush.msra.mxu0 %v1493
          %1598 = vmatpush.msra.mxu0 %v1491
          %1599 = vmatpush.msra.mxu0 %v1489
          %1600 = vmatpush.msra.mxu0 %v1487
          %1601 = vmatpush.msra.mxu0 %v1485
          %1602 = vmatpush.msra.mxu0 %v1483
          %1603 = vmatpush.msra.mxu0 %v1481
          %1604 = vmatpush.msra.mxu0 %v1479
          %1605 = vmatpush.msra.mxu0 %v1477
          %1606 = vmatpush.msra.mxu0 %v1475
          %1607 = vmatpush.msra.mxu0 %v1473
          %1608 = vmatpush.msra.mxu0 %v1471
          %1609 = vmatmul.f32.gmra.mxu0 %v1436
          %v1610 = vpop.f32.mrf.mxu0
          %v1611 = vadd.f32 %v1591, %v1610
          %1612 = vdwg.mxu0
          %1613 = vmatpush.msra.mxu0 %v1533
          %1614 = vmatpush.msra.mxu0 %v1531
          %1615 = vmatpush.msra.mxu0 %v1529
          %1616 = vmatpush.msra.mxu0 %v1527
          %1617 = vmatpush.msra.mxu0 %v1525
          %1618 = vmatpush.msra.mxu0 %v1523
          %1619 = vmatpush.msra.mxu0 %v1521
          %1620 = vmatpush.msra.mxu0 %v1519
          %1621 = vmatpush.msra.mxu0 %v1517
          %1622 = vmatpush.msra.mxu0 %v1515
          %1623 = vmatpush.msra.mxu0 %v1513
          %1624 = vmatpush.msra.mxu0 %v1511
          %1625 = vmatpush.msra.mxu0 %v1509
          %1626 = vmatpush.msra.mxu0 %v1507
          %1627 = vmatpush.msra.mxu0 %v1505
          %1628 = vmatpush.msra.mxu0 %v1503
          %1629 = vmatmul.f32.gmra.mxu0 %v1437
          %v1630 = vpop.f32.mrf.mxu0
          %v1631 = vadd.f32 %v1611, %v1630
          %1632 = vdwg.mxu0
          %1633 = vmatpush.msra.mxu0 %v1565
          %1634 = vmatpush.msra.mxu0 %v1563
          %1635 = vmatpush.msra.mxu0 %v1561
          %1636 = vmatpush.msra.mxu0 %v1559
          %1637 = vmatpush.msra.mxu0 %v1557
          %1638 = vmatpush.msra.mxu0 %v1555
          %1639 = vmatpush.msra.mxu0 %v1553
          %1640 = vmatpush.msra.mxu0 %v1551
          %1641 = vmatpush.msra.mxu0 %v1549
          %1642 = vmatpush.msra.mxu0 %v1547
          %1643 = vmatpush.msra.mxu0 %v1545
          %1644 = vmatpush.msra.mxu0 %v1543
          %1645 = vmatpush.msra.mxu0 %v1541
          %1646 = vmatpush.msra.mxu0 %v1539
          %1647 = vmatpush.msra.mxu0 %v1537
          %1648 = vmatpush.msra.mxu0 %v1535
          %1649 = vmatmul.f32.gmra.mxu0 %v1438
          %v1650 = vpop.f32.mrf.mxu0
          %v1651 = vadd.f32 %v1631, %v1650
          %1652 = vdwg.mxu0
          %1653 = vmatpush.msra.mxu0 %v1470
          %1654 = vmatpush.msra.mxu0 %v1468
          %1655 = vmatpush.msra.mxu0 %v1466
          %1656 = vmatpush.msra.mxu0 %v1464
          %1657 = vmatpush.msra.mxu0 %v1462
          %1658 = vmatpush.msra.mxu0 %v1460
          %1659 = vmatpush.msra.mxu0 %v1458
          %1660 = vmatpush.msra.mxu0 %v1456
          %1661 = vmatpush.msra.mxu0 %v1454
          %1662 = vmatpush.msra.mxu0 %v1452
          %1663 = vmatpush.msra.mxu0 %v1450
          %1664 = vmatpush.msra.mxu0 %v1448
          %1665 = vmatpush.msra.mxu0 %v1446
          %1666 = vmatpush.msra.mxu0 %v1444
          %1667 = vmatpush.msra.mxu0 %v1442
          %1668 = vmatpush.msra.mxu0 %v1440
          %1669 = vmatmul.f32.gmra.mxu0 %v1435
          %v1670 = vpop.f32.mrf.mxu0
          %v1671 = vadd.f32 %v1570, %v1670
          %1672 = vdwg.mxu0
          %1673 = vmatpush.msra.mxu0 %v1502
          %1674 = vmatpush.msra.mxu0 %v1500
          %1675 = vmatpush.msra.mxu0 %v1498
          %1676 = vmatpush.msra.mxu0 %v1496
          %1677 = vmatpush.msra.mxu0 %v1494
          %1678 = vmatpush.msra.mxu0 %v1492
          %1679 = vmatpush.msra.mxu0 %v1490
          %1680 = vmatpush.msra.mxu0 %v1488
          %1681 = vmatpush.msra.mxu0 %v1486
          %1682 = vmatpush.msra.mxu0 %v1484
          %1683 = vmatpush.msra.mxu0 %v1482
          %1684 = vmatpush.msra.mxu0 %v1480
          %1685 = vmatpush.msra.mxu0 %v1478
          %1686 = vmatpush.msra.mxu0 %v1476
          %1687 = vmatpush.msra.mxu0 %v1474
          %1688 = vmatpush.msra.mxu0 %v1472
          %1689 = vmatmul.f32.gmra.mxu0 %v1436
          %v1690 = vpop.f32.mrf.mxu0
          %v1691 = vadd.f32 %v1671, %v1690
          %1692 = vdwg.mxu0
          %1693 = vmatpush.msra.mxu0 %v1534
          %1694 = vmatpush.msra.mxu0 %v1532
          %1695 = vmatpush.msra.mxu0 %v1530
          %1696 = vmatpush.msra.mxu0 %v1528
          %1697 = vmatpush.msra.mxu0 %v1526
          %1698 = vmatpush.msra.mxu0 %v1524
          %1699 = vmatpush.msra.mxu0 %v1522
          %1700 = vmatpush.msra.mxu0 %v1520
          %1701 = vmatpush.msra.mxu0 %v1518
          %1702 = vmatpush.msra.mxu0 %v1516
          %1703 = vmatpush.msra.mxu0 %v1514
          %1704 = vmatpush.msra.mxu0 %v1512
          %1705 = vmatpush.msra.mxu0 %v1510
          %1706 = vmatpush.msra.mxu0 %v1508
          %1707 = vmatpush.msra.mxu0 %v1506
          %1708 = vmatpush.msra.mxu0 %v1504
          %1709 = vmatmul.f32.gmra.mxu0 %v1437
          %v1710 = vpop.f32.mrf.mxu0
          %v1711 = vadd.f32 %v1691, %v1710
          %1712 = vdwg.mxu0
          %1713 = vmatpush.msra.mxu0 %v1566
          %1714 = vmatpush.msra.mxu0 %v1564
          %1715 = vmatpush.msra.mxu0 %v1562
          %1716 = vmatpush.msra.mxu0 %v1560
          %1717 = vmatpush.msra.mxu0 %v1558
          %1718 = vmatpush.msra.mxu0 %v1556
          %1719 = vmatpush.msra.mxu0 %v1554
          %1720 = vmatpush.msra.mxu0 %v1552
          %1721 = vmatpush.msra.mxu0 %v1550
          %1722 = vmatpush.msra.mxu0 %v1548
          %1723 = vmatpush.msra.mxu0 %v1546
          %1724 = vmatpush.msra.mxu0 %v1544
          %1725 = vmatpush.msra.mxu0 %v1542
          %1726 = vmatpush.msra.mxu0 %v1540
          %1727 = vmatpush.msra.mxu0 %v1538
          %1728 = vmatpush.msra.mxu0 %v1536
          %1729 = vmatmul.f32.gmra.mxu0 %v1438
          %v1730 = vpop.f32.mrf.mxu0
          %v1731 = vadd.f32 %v1711, %v1730
          %1732 = vdwg.mxu0
          %v1733 = vmax.f32 %v1651, 0.0
          %v1734 = vmax.f32 %v1731, 0.0
          %v1735 = vld [vmem:[%s10] sm:$0xf]
          %v1737 = vperm.slane %v1735, 0
          %v1738 = vperm.slane %v1735, 1
          %v1739 = vperm.slane %v1735, 2
          %v1740 = vperm.slane %v1735, 3
          %v1745 = vmul.f32 %v1038, %v1737
          %v1746 = vmul.f32 %v1118, %v1738
          %v1747 = vmul.f32 %v1198, %v1739
          %v1748 = vmul.f32 %v1278, %v1740
          %vm1749 = vcmask 1041408
          %v1750 = vsel %vm1749, %v1745, 0.0
          %v1751 = vsel %vm1749, %v1746, 0.0
          %v1752 = vadd.f32 %v1750, %v1751
          %v1753 = vsel %vm1749, %v1747, 0.0
          %v1754 = vadd.f32 %v1752, %v1753
          %v1755 = vsel %vm1749, %v1748, 0.0
          %v1756 = vadd.f32 %v1754, %v1755
          %1757 = vadd.xlane.f32.xlu0 %v1756
          %v1758 = vpop.xlane.xlu0 %1757
          %v1759 = vld [vmem:[%s11] sm:$0x3]
          %v1761 = vperm.slane %v1759, 0
          %v1762 = vperm.slane %v1759, 1
          %v1765 = vmul.f32 %v1733, %v1761
          %v1766 = vmul.f32 %v1734, %v1762
          %v1767 = vsel %vm1749, %v1765, 0.0
          %v1768 = vsel %vm1749, %v1766, 0.0
          %v1769 = vadd.f32 %v1767, %v1768
          %1770 = vadd.xlane.f32.xlu0 %v1769
          %v1771 = vpop.xlane.xlu0 %1770
          %v1772 = vadd.f32 %v1758, %v1771
          %s1773 = sld [smem:[#allocation3]]
          %v1774 = vstv %s1773
          %v1775 = vadd.f32 %v1772, %v1774
          %vm1776 = vcmask 1024
          %1777 = vst.msk [vmem:[%s576] sm:$0x3] %vm1776, %v1775
        $region137: #{tpu_custom_call.1} parent=108 // pred_fallthru
          _
        %p1778 = scmp.lt.s32.totalorder %s32, 0
        %s1779 = scalar_select %p1778, %s32, 0
        %s1780 = smul.addr %s1779, 2
        %s1781 = scalar_lea.vmem %s13, %s1780
        // Predicated region
        $region138: #{tpu_custom_call.1} parent=108 // pred_check
          %p1782 = pneg %p343
        $region139: #{tpu_custom_call.1} parent=108 // pred_check_branch
          %1784 = sbr.rel (%p1782) target = $region141
        $region140: #{tpu_custom_call.1} parent=108 // pred_region
          _
        $region141: #{tpu_custom_call.1} parent=108 // pred_fallthru
          _
        // Predicated region
        $region142: #{tpu_custom_call.1} parent=108 // pred_check
          %p1785 = pneg %p343
        $region143: #{tpu_custom_call.1} parent=108 // pred_check_branch
          %1787 = sbr.rel (%p1785) target = $region145
        $region144: #{tpu_custom_call.1} parent=108 // pred_region
          %p1788 = scmp.lt.s32.totalorder %s32, 0
          %s1789 = scalar_select %p1788, %s32, 0
          %s1790 = smul.addr %s1789, 2
          %s1791 = scalar_lea.vmem %s13, %s1790
        $region145: #{tpu_custom_call.1} parent=108 // pred_fallthru
          _
      $region109: #{tpu_custom_call.1} parent=5 // pred_fallthru
        _
      %p1792 = scmp.le.s32.totalorder 2, %s23
      // Predicated region
      $region146: #{tpu_custom_call.1} parent=5 // pred_check
        %p1793 = pneg %p1792
      $region147: #{tpu_custom_call.1} parent=5 // pred_check_branch
        %1795 = sbr.rel (%p1793) target = $region149
      $region148: #{tpu_custom_call.1} parent=5 // pred_region
        %s1796 = ssub.s32 %s23, 2
      $region149: #{tpu_custom_call.1} parent=5 // pred_fallthru
        _
    $region6: #{tpu_custom_call.1} parent=1 // loop_footer
      %s27 = sadd.s32 1, %s23
    $region7: #{tpu_custom_call.1} parent=1 // loop_footer_branch
      %22 = sbr.rel target = $region3
    $region8: #{tpu_custom_call.1} parent=1 // loop_exit
      _
    %1797 = vsyncpa [#allocation6], 1
    %s1798 = scalar_lea.sflag [#allocation6], 1
    %1799 = vsyncpa %s1798, 1
    %1800 = vsyncpa [#allocation8], 1
    %1801 = vsyncpa [#allocation11], 1

</llo_original>
